<compile_context>
chip_gen: v6e
topology: v6e:2x2x1
jax: 0.10.0
libtpu: 0.0.40
codegen_flags: <defaults>
</compile_context>

<pallas_src>
import functools

import jax
import jax.numpy as jnp
import numpy as np
from jax.experimental import pallas as pl
from jax.experimental.pallas import tpu as pltpu


# ---------------------------------------------------------------------------
# Pallas kernel: full forward (all message passes + readout) for Bt graphs.
# ---------------------------------------------------------------------------
def _mpnn_kernel(
    adj_ref, nodes_ref, edges_ref,
    w_hm_ref, w_em_ref, w_upd_ref, w_rd_ref,
    out_ref,
    *, n_graphs, n_nodes, node_features, edge_features, message_size,
    message_passes,
):
    Bt, N = n_graphs, n_nodes
    Dn, De, M = node_features, edge_features, message_size

    adj = adj_ref[...]                                    # (Bt, N, N)
    x0 = nodes_ref[...].reshape(Bt * N, Dn)               # (Bt*N, Dn)
    e2d = edges_ref[...].reshape(Bt * N * N, De)          # (Bt*N*N, De)

    # Packed weight slabs.
    w_hm = w_hm_ref[...]                                  # (Dn, 2M)   = [Wn | Wnb]
    we = w_em_ref[:De, :]                                 # (De, M)
    bm = w_em_ref[De:, :]                                 # (1, M)
    w_um = w_upd_ref[:Dn + M, :]                          # (Dn+M, Dn) = [Wun ; Wum]
    bu = w_upd_ref[Dn + M:, :]                            # (1, Dn)
    w_hx = w_rd_ref[:2 * Dn, :]                           # (2Dn, Opad) = [Wrh ; Wrx]
    br = w_rd_ref[2 * Dn:, :]                             # (1, Opad)

    # Masks, computed/broadcast once per grid step (hoisted out of the loop).
    msg_mask4 = jnp.broadcast_to(
        (adj != 0.0).astype(jnp.float32)[:, :, :, None], (Bt, N, N, M))
    # PyTorch semantics: adjacency.sum(-1).nonzero() -> nodes with row-sum != 0.
    node_mask = (jnp.sum(adj, axis=-1) != 0.0).reshape(Bt * N, 1)
    node_mask_h = jnp.broadcast_to(node_mask, (Bt * N, Dn))

    # Edge contribution to message_terms: one MXU matmul, bias folded in.
    #   x3[b,i,j,:] = edges[b,i,j,:] @ We + bm
    x3 = jnp.dot(e2d, we, preferred_element_type=jnp.float32) + bm
    x3 = x3.reshape(Bt, N, N, M)

    def one_pass(_, h):
        # Fused message matmul: h @ [Wn | Wnb], then split into the two terms.
        x12 = jnp.dot(h, w_hm, preferred_element_type=jnp.float32)    # (Bt*N, 2M)
        x1 = x12[:, :M].reshape(Bt, N, M)
        x2 = x12[:, M:].reshape(Bt, N, M)
        # message_terms(h_i, h_j, e_ij) = relu(h_i@Wn + h_j@Wnb + e_ij@We + bm)
        mt = jax.nn.relu(x1[:, :, None, :] + x2[:, None, :, :] + x3)  # (Bt,N,N,M)
        # messages[b,i] = sum_j mask[b,i,j] * mt[b,i,j]
        messages = jnp.sum(msg_mask4 * mt, axis=2).reshape(Bt * N, M)
        # Fused update matmul: [h | messages] @ [Wun ; Wum] + bu
        hm = jnp.concatenate([h, messages], axis=-1)                  # (Bt*N, Dn+M)
        upd = jnp.tanh(
            jnp.dot(hm, w_um, preferred_element_type=jnp.float32) + bu)
        # Only nodes with at least one edge get updated; others keep state.
        return jnp.where(node_mask_h, upd, h)

    h = jax.lax.fori_loop(0, message_passes, one_pass, x0, unroll=True)

    # Readout: masked sum over nodes of a fused linear head on [h | x0].
    hx = jnp.concatenate([h, x0], axis=-1)                            # (Bt*N, 2Dn)
    r = jnp.dot(hx, w_hx, preferred_element_type=jnp.float32) + br    # (Bt*N, Opad)
    r = jnp.where(node_mask, r, 0.0)
    out_ref[...] = jnp.sum(r.reshape(Bt, N, -1), axis=1)              # (Bt, Opad)


# ---------------------------------------------------------------------------
# Wrapper
# ---------------------------------------------------------------------------
def summation_mpnn_forward(adjacency, nodes, edges, params, *, message_passes,
                           batch_tile=None):
    B, N, _ = adjacency.shape
    Dn = nodes.shape[-1]
    De = edges.shape[-1]
    M = params["wn"].shape[-1]
    O = params["wrh"].shape[-1]
    O_pad = ((O + 127) // 128) * 128          # lane-dense output slab

    # Graphs per grid step.  For the demo batch the whole batch fits one step;
    # for large B pick Bt so that (a) B//Bt >= 2 (v7x has 2 TensorCores) and
    # (b) the double-buffered edge tile + (Bt,N,N,M) intermediates fit VMEM
    # (64 MiB physical on v7x, 128 MiB on v5e/v6e).
    if batch_tile is None:
        batch_tile = B
    Bt = batch_tile
    assert B % Bt == 0, "batch must be divisible by batch_tile"
    nb = B // Bt

    f32 = jnp.float32
    # Pack the 10 weight/bias tensors into 4 slabs (fewer DMAs, fused matmuls).
    w_hm = jnp.concatenate([params["wn"], params["wnb"]], axis=1).astype(f32)
    w_em = jnp.concatenate([params["we"], params["bm"]], axis=0).astype(f32)
    w_upd = jnp.concatenate(
        [params["wun"], params["wum"], params["bu"]], axis=0).astype(f32)
    pad = ((0, 0), (0, O_pad - O))
    w_rd = jnp.concatenate(
        [jnp.pad(params["wrh"], pad),
         jnp.pad(params["wrx"], pad),
         jnp.pad(params["br"], pad)], axis=0).astype(f32)

    # Contiguous edge slab: (B, N*N, De) — feeds the x3 matmul directly.
    edges_flat = edges.reshape(B, N * N, De).astype(f32)

    kernel = functools.partial(
        _mpnn_kernel,
        n_graphs=Bt, n_nodes=N, node_features=Dn, edge_features=De,
        message_size=M, message_passes=message_passes)

    in_specs = [
        pl.BlockSpec((Bt, N, N), lambda b: (b, 0, 0)),
        pl.BlockSpec((Bt, N, Dn), lambda b: (b, 0, 0)),
        pl.BlockSpec((Bt, N * N, De), lambda b: (b, 0, 0)),
        pl.BlockSpec(w_hm.shape, lambda b: (0, 0)),
        pl.BlockSpec(w_em.shape, lambda b: (0, 0)),
        pl.BlockSpec(w_upd.shape, lambda b: (0, 0)),
        pl.BlockSpec(w_rd.shape, lambda b: (0, 0)),
    ]

    out_pad = pl.pallas_call(
        kernel,
        out_shape=jax.ShapeDtypeStruct((B, O_pad), f32),
        grid_spec=pltpu.PrefetchScalarGridSpec(
            num_scalar_prefetch=0,
            grid=(nb,),
            in_specs=in_specs,
            out_specs=pl.BlockSpec((Bt, O_pad), lambda b: (b, 0)),
        ),
        compiler_params=pltpu.CompilerParams(
            dimension_semantics=("parallel",),
            vmem_limit_bytes=32 * 1024 * 1024,   # safe on v5e/v6e/v7x
        ),
    )(adjacency.astype(f32), nodes.astype(f32), edges_flat,
      w_hm, w_em, w_upd, w_rd)

    return out_pad[:, :O]


# ---------------------------------------------------------------------------
# Pure-JAX reference (same dense math, unpacked weights) for validation
# ---------------------------------------------------------------------------
def reference_forward(adjacency, nodes, edges, params, *, message_passes):
    msg_mask = (adjacency != 0.0).astype(jnp.float32)              # (B,N,N)
    node_mask = jnp.sum(adjacency, axis=-1, keepdims=True) != 0.0  # (B,N,1)

    x3 = jnp.einsum("bijk,km->bijm", edges, params["we"])
    h = nodes
    for _ in range(message_passes):
        x1 = h @ params["wn"]
        x2 = h @ params["wnb"]
        mt = jax.nn.relu(x1[:, :, None, :] + x2[:, None, :, :] + x3
                         + params["bm"][None, :, :])
        messages = jnp.sum(msg_mask[:, :, :, None] * mt, axis=2)
        upd = jnp.tanh(h @ params["wun"] + messages @ params["wum"] + params["bu"])
        h = jnp.where(node_mask, upd, h)

    r = h @ params["wrh"] + nodes @ params["wrx"] + params["br"]
    r = jnp.where(node_mask, r, 0.0)
    return jnp.sum(r, axis=1)


# ---------------------------------------------------------------------------
# Main
# ---------------------------------------------------------------------------
if __name__ == "__main__":
    B = 2
    N = 8                  # nodes per graph
    node_features = 8
    edge_features = 4
    message_size = 16
    message_passes = 3
    out_features = 8

    key = jax.random.PRNGKey(0)
    keys = jax.random.split(key, 16)

    s = 0.1
    params = {
        "wn":  s * jax.random.normal(keys[0], (node_features, message_size), jnp.float32),
        "wnb": s * jax.random.normal(keys[1], (node_features, message_size), jnp.float32),
        "we":  s * jax.random.normal(keys[2], (edge_features, message_size), jnp.float32),
        "bm":  s * jax.random.normal(keys[3], (1, message_size), jnp.float32),
        "wun": s * jax.random.normal(keys[4], (node_features, node_features), jnp.float32),
        "wum": s * jax.random.normal(keys[5], (message_size, node_features), jnp.float32),
        "bu":  s * jax.random.normal(keys[6], (1, node_features), jnp.float32),
        "wrh": s * jax.random.normal(keys[7], (node_features, out_features), jnp.float32),
        "wrx": s * jax.random.normal(keys[8], (node_features, out_features), jnp.float32),
        "br":  s * jax.random.normal(keys[9], (1, out_features), jnp.float32),
    }

    # synthetic graph data
    adjacency = (jax.random.uniform(keys[10], (B, N, N)) > 0.5).astype(jnp.float32)
    # no self loops; last node isolated (exercises the node-mask path)
    eye = jnp.eye(N, dtype=jnp.float32)[None]
    adjacency = adjacency * (1.0 - eye)
    adjacency = adjacency.at[:, N - 1, :].set(0.0).at[:, :, N - 1].set(0.0)

    nodes = jax.random.normal(keys[11], (B, N, node_features), jnp.float32)
    edges = jax.random.normal(keys[12], (B, N, N, edge_features), jnp.float32)

    out = summation_mpnn_forward(adjacency, nodes, edges, params,
                                 message_passes=message_passes,
                                 batch_tile=B)
    out = jax.block_until_ready(out)

    ref = jax.block_until_ready(
        reference_forward(adjacency, nodes, edges, params,
                          message_passes=message_passes)
    )

    assert out.shape == (B, out_features), out.shape
    np.testing.assert_allclose(np.asarray(out), np.asarray(ref), rtol=5e-3, atol=5e-3)
    print("KERNEL_OK")
</pallas_src>

<mosaic_0001>
module attributes {stable_mosaic.version = 11 : i64} {
  func.func @_mpnn_kernel(%arg0: i32, %arg1: memref<2x8x8xf32, #tpu.memory_space<vmem>>, %arg2: memref<2x8x8xf32, #tpu.memory_space<vmem>>, %arg3: memref<2x64x4xf32, #tpu.memory_space<vmem>>, %arg4: memref<8x32xf32, #tpu.memory_space<vmem>>, %arg5: memref<5x16xf32, #tpu.memory_space<vmem>>, %arg6: memref<25x8xf32, #tpu.memory_space<vmem>>, %arg7: memref<17x128xf32, #tpu.memory_space<vmem>>, %arg8: memref<2x128xf32, #tpu.memory_space<vmem>>) attributes {dimension_semantics = [#tpu.dimension_semantics<parallel>], iteration_bounds = array<i64: 1>, scalar_prefetch = 0 : i64, scratch_operands = 0 : i64, tpu.core_type = #tpu.core_type<tc>, window_params = [{transform_indices = @transform_0, window_bounds = array<i64: 2, 8, 8>}, {transform_indices = @transform_1, window_bounds = array<i64: 2, 8, 8>}, {transform_indices = @transform_2, window_bounds = array<i64: 2, 64, 4>}, {pipeline_mode = #tpu.pipeline_mode<synchronous>, transform_indices = @transform_3, window_bounds = array<i64: 8, 32>}, {pipeline_mode = #tpu.pipeline_mode<synchronous>, transform_indices = @transform_4, window_bounds = array<i64: 5, 16>}, {pipeline_mode = #tpu.pipeline_mode<synchronous>, transform_indices = @transform_5, window_bounds = array<i64: 25, 8>}, {pipeline_mode = #tpu.pipeline_mode<synchronous>, transform_indices = @transform_6, window_bounds = array<i64: 17, 128>}, {transform_indices = @transform_7, window_bounds = array<i64: 2, 128>}]} {
    %c0 = arith.constant 0 : index
    %c0_0 = arith.constant 0 : index
    %c0_1 = arith.constant 0 : index
    %0 = vector.load %arg1[%c0, %c0_0, %c0_1] : memref<2x8x8xf32, #tpu.memory_space<vmem>>, vector<2x8x8xf32>
    %c0_2 = arith.constant 0 : index
    %c0_3 = arith.constant 0 : index
    %c0_4 = arith.constant 0 : index
    %1 = vector.load %arg2[%c0_2, %c0_3, %c0_4] : memref<2x8x8xf32, #tpu.memory_space<vmem>>, vector<2x8x8xf32>
    %2 = vector.shape_cast %1 : vector<2x8x8xf32> to vector<16x8xf32>
    %c0_5 = arith.constant 0 : index
    %c0_6 = arith.constant 0 : index
    %c0_7 = arith.constant 0 : index
    %3 = vector.load %arg3[%c0_5, %c0_6, %c0_7] : memref<2x64x4xf32, #tpu.memory_space<vmem>>, vector<2x64x4xf32>
    %4 = vector.shape_cast %3 : vector<2x64x4xf32> to vector<128x4xf32>
    %c0_8 = arith.constant 0 : index
    %c0_9 = arith.constant 0 : index
    %5 = vector.load %arg4[%c0_8, %c0_9] : memref<8x32xf32, #tpu.memory_space<vmem>>, vector<8x32xf32>
    %c0_10 = arith.constant 0 : index
    %c0_11 = arith.constant 0 : index
    %6 = vector.load %arg5[%c0_10, %c0_11] : memref<5x16xf32, #tpu.memory_space<vmem>>, vector<4x16xf32>
    %c4 = arith.constant 4 : index
    %c0_12 = arith.constant 0 : index
    %7 = vector.load %arg5[%c4, %c0_12] : memref<5x16xf32, #tpu.memory_space<vmem>>, vector<1x16xf32>
    %c0_13 = arith.constant 0 : index
    %c0_14 = arith.constant 0 : index
    %8 = vector.load %arg6[%c0_13, %c0_14] : memref<25x8xf32, #tpu.memory_space<vmem>>, vector<24x8xf32>
    %c24 = arith.constant 24 : index
    %c0_15 = arith.constant 0 : index
    %9 = vector.load %arg6[%c24, %c0_15] : memref<25x8xf32, #tpu.memory_space<vmem>>, vector<1x8xf32>
    %c0_16 = arith.constant 0 : index
    %c0_17 = arith.constant 0 : index
    %10 = vector.load %arg7[%c0_16, %c0_17] : memref<17x128xf32, #tpu.memory_space<vmem>>, vector<16x128xf32>
    %c16 = arith.constant 16 : index
    %c0_18 = arith.constant 0 : index
    %11 = vector.load %arg7[%c16, %c0_18] : memref<17x128xf32, #tpu.memory_space<vmem>>, vector<1x128xf32>
    %cst = arith.constant 0.000000e+00 : f32
    %12 = vector.broadcast %cst : f32 to vector<2x8x8xf32>
    %13 = arith.cmpf one, %0, %12 : vector<2x8x8xf32>
    %14 = arith.extui %13 : vector<2x8x8xi1> to vector<2x8x8xi32>
    %15 = arith.sitofp %14 : vector<2x8x8xi32> to vector<2x8x8xf32>
    %16 = vector.shape_cast %15 : vector<2x8x8xf32> to vector<2x8x8x1xf32>
    %17 = vector.shape_cast %16 : vector<2x8x8x1xf32> to vector<2x8x8x1xf32>
    %18 = vector.broadcast %17 : vector<2x8x8x1xf32> to vector<2x8x8x16xf32>
    %cst_19 = arith.constant dense<0.000000e+00> : vector<2x8xf32>
    %19 = vector.multi_reduction <add>, %0, %cst_19 [2] : vector<2x8x8xf32> to vector<2x8xf32>
    %cst_20 = arith.constant 0.000000e+00 : f32
    %20 = vector.broadcast %cst_20 : f32 to vector<2x8xf32>
    %21 = arith.cmpf one, %19, %20 : vector<2x8xf32>
    %22 = vector.shape_cast %21 : vector<2x8xi1> to vector<16x1xi1>
    %23 = vector.shape_cast %22 : vector<16x1xi1> to vector<16x1xi1>
    %24 = vector.broadcast %23 : vector<16x1xi1> to vector<16x8xi1>
    %cst_21 = arith.constant dense<0.000000e+00> : vector<128x16xf32>
    %25 = tpu.matmul %4, %6, %cst_21 {dimension_numbers = #tpu.dot_dimension_numbers<[1], [0], [0], [1], [0, 0, 1, 1], [], []>} : vector<128x4xf32>, vector<4x16xf32>, vector<128x16xf32> -> vector<128x16xf32>
    %26 = vector.broadcast %7 : vector<1x16xf32> to vector<128x16xf32>
    %27 = arith.addf %25, %26 : vector<128x16xf32>
    %28 = vector.shape_cast %27 : vector<128x16xf32> to vector<2x8x8x16xf32>
    %c0_i32 = arith.constant 0 : i32
    %cst_22 = arith.constant dense<0.000000e+00> : vector<16x32xf32>
    %29 = tpu.matmul %2, %5, %cst_22 {dimension_numbers = #tpu.dot_dimension_numbers<[1], [0], [0], [1], [0, 0, 1, 1], [], []>} : vector<16x8xf32>, vector<8x32xf32>, vector<16x32xf32> -> vector<16x32xf32>
    %30 = vector.extract_strided_slice %29 {offsets = [0, 0], sizes = [16, 16], strides = [1, 1]} : vector<16x32xf32> to vector<16x16xf32>
    %31 = vector.shape_cast %30 : vector<16x16xf32> to vector<2x8x16xf32>
    %32 = vector.extract_strided_slice %29 {offsets = [0, 16], sizes = [16, 16], strides = [1, 1]} : vector<16x32xf32> to vector<16x16xf32>
    %33 = vector.shape_cast %32 : vector<16x16xf32> to vector<2x8x16xf32>
    %34 = vector.shape_cast %31 : vector<2x8x16xf32> to vector<2x8x1x16xf32>
    %35 = vector.shape_cast %33 : vector<2x8x16xf32> to vector<2x1x8x16xf32>
    %36 = vector.broadcast %34 : vector<2x8x1x16xf32> to vector<2x8x8x16xf32>
    %37 = vector.broadcast %35 : vector<2x1x8x16xf32> to vector<2x8x8x16xf32>
    %38 = arith.addf %36, %37 : vector<2x8x8x16xf32>
    %39 = arith.addf %38, %28 : vector<2x8x8x16xf32>
    %cst_23 = arith.constant 0.000000e+00 : f32
    %40 = vector.broadcast %cst_23 : f32 to vector<2x8x8x16xf32>
    %41 = arith.maximumf %39, %40 : vector<2x8x8x16xf32>
    %42 = arith.mulf %18, %41 : vector<2x8x8x16xf32>
    %cst_24 = arith.constant dense<0.000000e+00> : vector<2x8x16xf32>
    %43 = vector.multi_reduction <add>, %42, %cst_24 [2] : vector<2x8x8x16xf32> to vector<2x8x16xf32>
    %44 = vector.shape_cast %43 : vector<2x8x16xf32> to vector<16x16xf32>
    %45 = tpu.concatenate %2, %44 in 1 : vector<16x8xf32>, vector<16x16xf32> -> vector<16x24xf32>
    %cst_25 = arith.constant dense<0.000000e+00> : vector<16x8xf32>
    %46 = tpu.matmul %45, %8, %cst_25 {dimension_numbers = #tpu.dot_dimension_numbers<[1], [0], [0], [1], [0, 0, 1, 1], [], []>} : vector<16x24xf32>, vector<24x8xf32>, vector<16x8xf32> -> vector<16x8xf32>
    %47 = vector.broadcast %9 : vector<1x8xf32> to vector<16x8xf32>
    %48 = arith.addf %46, %47 : vector<16x8xf32>
    %49 = math.tanh %48 : vector<16x8xf32>
    %50 = arith.select %24, %49, %2 : vector<16x8xi1>, vector<16x8xf32>
    %c1_i32 = arith.constant 1 : i32
    %cst_26 = arith.constant dense<0.000000e+00> : vector<16x32xf32>
    %51 = tpu.matmul %50, %5, %cst_26 {dimension_numbers = #tpu.dot_dimension_numbers<[1], [0], [0], [1], [0, 0, 1, 1], [], []>} : vector<16x8xf32>, vector<8x32xf32>, vector<16x32xf32> -> vector<16x32xf32>
    %52 = vector.extract_strided_slice %51 {offsets = [0, 0], sizes = [16, 16], strides = [1, 1]} : vector<16x32xf32> to vector<16x16xf32>
    %53 = vector.shape_cast %52 : vector<16x16xf32> to vector<2x8x16xf32>
    %54 = vector.extract_strided_slice %51 {offsets = [0, 16], sizes = [16, 16], strides = [1, 1]} : vector<16x32xf32> to vector<16x16xf32>
    %55 = vector.shape_cast %54 : vector<16x16xf32> to vector<2x8x16xf32>
    %56 = vector.shape_cast %53 : vector<2x8x16xf32> to vector<2x8x1x16xf32>
    %57 = vector.shape_cast %55 : vector<2x8x16xf32> to vector<2x1x8x16xf32>
    %58 = vector.broadcast %56 : vector<2x8x1x16xf32> to vector<2x8x8x16xf32>
    %59 = vector.broadcast %57 : vector<2x1x8x16xf32> to vector<2x8x8x16xf32>
    %60 = arith.addf %58, %59 : vector<2x8x8x16xf32>
    %61 = arith.addf %60, %28 : vector<2x8x8x16xf32>
    %cst_27 = arith.constant 0.000000e+00 : f32
    %62 = vector.broadcast %cst_27 : f32 to vector<2x8x8x16xf32>
    %63 = arith.maximumf %61, %62 : vector<2x8x8x16xf32>
    %64 = arith.mulf %18, %63 : vector<2x8x8x16xf32>
    %cst_28 = arith.constant dense<0.000000e+00> : vector<2x8x16xf32>
    %65 = vector.multi_reduction <add>, %64, %cst_28 [2] : vector<2x8x8x16xf32> to vector<2x8x16xf32>
    %66 = vector.shape_cast %65 : vector<2x8x16xf32> to vector<16x16xf32>
    %67 = tpu.concatenate %50, %66 in 1 : vector<16x8xf32>, vector<16x16xf32> -> vector<16x24xf32>
    %cst_29 = arith.constant dense<0.000000e+00> : vector<16x8xf32>
    %68 = tpu.matmul %67, %8, %cst_29 {dimension_numbers = #tpu.dot_dimension_numbers<[1], [0], [0], [1], [0, 0, 1, 1], [], []>} : vector<16x24xf32>, vector<24x8xf32>, vector<16x8xf32> -> vector<16x8xf32>
    %69 = vector.broadcast %9 : vector<1x8xf32> to vector<16x8xf32>
    %70 = arith.addf %68, %69 : vector<16x8xf32>
    %71 = math.tanh %70 : vector<16x8xf32>
    %72 = arith.select %24, %71, %50 : vector<16x8xi1>, vector<16x8xf32>
    %c2_i32 = arith.constant 2 : i32
    %cst_30 = arith.constant dense<0.000000e+00> : vector<16x32xf32>
    %73 = tpu.matmul %72, %5, %cst_30 {dimension_numbers = #tpu.dot_dimension_numbers<[1], [0], [0], [1], [0, 0, 1, 1], [], []>} : vector<16x8xf32>, vector<8x32xf32>, vector<16x32xf32> -> vector<16x32xf32>
    %74 = vector.extract_strided_slice %73 {offsets = [0, 0], sizes = [16, 16], strides = [1, 1]} : vector<16x32xf32> to vector<16x16xf32>
    %75 = vector.shape_cast %74 : vector<16x16xf32> to vector<2x8x16xf32>
    %76 = vector.extract_strided_slice %73 {offsets = [0, 16], sizes = [16, 16], strides = [1, 1]} : vector<16x32xf32> to vector<16x16xf32>
    %77 = vector.shape_cast %76 : vector<16x16xf32> to vector<2x8x16xf32>
    %78 = vector.shape_cast %75 : vector<2x8x16xf32> to vector<2x8x1x16xf32>
    %79 = vector.shape_cast %77 : vector<2x8x16xf32> to vector<2x1x8x16xf32>
    %80 = vector.broadcast %78 : vector<2x8x1x16xf32> to vector<2x8x8x16xf32>
    %81 = vector.broadcast %79 : vector<2x1x8x16xf32> to vector<2x8x8x16xf32>
    %82 = arith.addf %80, %81 : vector<2x8x8x16xf32>
    %83 = arith.addf %82, %28 : vector<2x8x8x16xf32>
    %cst_31 = arith.constant 0.000000e+00 : f32
    %84 = vector.broadcast %cst_31 : f32 to vector<2x8x8x16xf32>
    %85 = arith.maximumf %83, %84 : vector<2x8x8x16xf32>
    %86 = arith.mulf %18, %85 : vector<2x8x8x16xf32>
    %cst_32 = arith.constant dense<0.000000e+00> : vector<2x8x16xf32>
    %87 = vector.multi_reduction <add>, %86, %cst_32 [2] : vector<2x8x8x16xf32> to vector<2x8x16xf32>
    %88 = vector.shape_cast %87 : vector<2x8x16xf32> to vector<16x16xf32>
    %89 = tpu.concatenate %72, %88 in 1 : vector<16x8xf32>, vector<16x16xf32> -> vector<16x24xf32>
    %cst_33 = arith.constant dense<0.000000e+00> : vector<16x8xf32>
    %90 = tpu.matmul %89, %8, %cst_33 {dimension_numbers = #tpu.dot_dimension_numbers<[1], [0], [0], [1], [0, 0, 1, 1], [], []>} : vector<16x24xf32>, vector<24x8xf32>, vector<16x8xf32> -> vector<16x8xf32>
    %91 = vector.broadcast %9 : vector<1x8xf32> to vector<16x8xf32>
    %92 = arith.addf %90, %91 : vector<16x8xf32>
    %93 = math.tanh %92 : vector<16x8xf32>
    %94 = arith.select %24, %93, %72 : vector<16x8xi1>, vector<16x8xf32>
    %95 = tpu.concatenate %94, %2 in 1 : vector<16x8xf32>, vector<16x8xf32> -> vector<16x16xf32>
    %cst_34 = arith.constant dense<0.000000e+00> : vector<16x128xf32>
    %96 = tpu.matmul %95, %10, %cst_34 {dimension_numbers = #tpu.dot_dimension_numbers<[1], [0], [0], [1], [0, 0, 1, 1], [], []>} : vector<16x16xf32>, vector<16x128xf32>, vector<16x128xf32> -> vector<16x128xf32>
    %97 = vector.broadcast %11 : vector<1x128xf32> to vector<16x128xf32>
    %98 = arith.addf %96, %97 : vector<16x128xf32>
    %cst_35 = arith.constant 0.000000e+00 : f32
    %99 = vector.shape_cast %22 : vector<16x1xi1> to vector<16x1xi1>
    %100 = vector.broadcast %99 : vector<16x1xi1> to vector<16x128xi1>
    %101 = vector.broadcast %cst_35 : f32 to vector<16x128xf32>
    %102 = arith.select %100, %98, %101 : vector<16x128xi1>, vector<16x128xf32>
    %103 = vector.shape_cast %102 : vector<16x128xf32> to vector<2x8x128xf32>
    %cst_36 = arith.constant dense<0.000000e+00> : vector<2x128xf32>
    %104 = vector.multi_reduction <add>, %103, %cst_36 [1] : vector<2x8x128xf32> to vector<2x128xf32>
    %c0_37 = arith.constant 0 : index
    %c0_38 = arith.constant 0 : index
    %105 = vector.load %arg8[%c0_37, %c0_38] : memref<2x128xf32, #tpu.memory_space<vmem>>, vector<2x128xf32>
    tpu.vector_store %arg8[%c0_37, %c0_38], %104 {strides = array<i32>} : memref<2x128xf32, #tpu.memory_space<vmem>>, vector<2x128xf32>,
    return
  }
  func.func @transform_0(%arg0: i32) -> (i32, i32, i32) {
    %c0_i32 = arith.constant 0 : i32
    %c0_i32_0 = arith.constant 0 : i32
    %c0_i32_1 = arith.constant 0 : i32
    return %arg0, %c0_i32, %c0_i32_0 : i32, i32, i32
  }
  func.func @transform_1(%arg0: i32) -> (i32, i32, i32) {
    %c0_i32 = arith.constant 0 : i32
    %c0_i32_0 = arith.constant 0 : i32
    %c0_i32_1 = arith.constant 0 : i32
    return %arg0, %c0_i32, %c0_i32_0 : i32, i32, i32
  }
  func.func @transform_2(%arg0: i32) -> (i32, i32, i32) {
    %c0_i32 = arith.constant 0 : i32
    %c0_i32_0 = arith.constant 0 : i32
    %c0_i32_1 = arith.constant 0 : i32
    return %arg0, %c0_i32, %c0_i32_0 : i32, i32, i32
  }
  func.func @transform_3(%arg0: i32) -> (i32, i32) {
    %c0_i32 = arith.constant 0 : i32
    %c0_i32_0 = arith.constant 0 : i32
    %c0_i32_1 = arith.constant 0 : i32
    return %c0_i32, %c0_i32_0 : i32, i32
  }
  func.func @transform_4(%arg0: i32) -> (i32, i32) {
    %c0_i32 = arith.constant 0 : i32
    %c0_i32_0 = arith.constant 0 : i32
    %c0_i32_1 = arith.constant 0 : i32
    return %c0_i32, %c0_i32_0 : i32, i32
  }
  func.func @transform_5(%arg0: i32) -> (i32, i32) {
    %c0_i32 = arith.constant 0 : i32
    %c0_i32_0 = arith.constant 0 : i32
    %c0_i32_1 = arith.constant 0 : i32
    return %c0_i32, %c0_i32_0 : i32, i32
  }
  func.func @transform_6(%arg0: i32) -> (i32, i32) {
    %c0_i32 = arith.constant 0 : i32
    %c0_i32_0 = arith.constant 0 : i32
    %c0_i32_1 = arith.constant 0 : i32
    return %c0_i32, %c0_i32_0 : i32, i32
  }
  func.func @transform_7(%arg0: i32) -> (i32, i32) {
    %c0_i32 = arith.constant 0 : i32
    %c0_i32_0 = arith.constant 0 : i32
    return %arg0, %c0_i32 : i32, i32
  }
}

</mosaic_0001>

<llo_original>
// kernel: tpu_custom_call.1
$region0: #{tpu_custom_call.1}
  #allocation0 [shape = 'u32[]', space=smem, size = 0x4, offset = 0x4, fixed_abs, tag = 'smem constant byte address 0x4 - core index']
  #allocation1 [shape = 'u32[144,128]{1,0:T(1,128)}', space=vmem, size = 0x12000, scoped, tag = 'internal scratch']
  %s0 = inlined_call_operand.vmem [shape: f32[2,8,8], index: 0, kind: input, shape index: {}]
  %s1 = inlined_call_operand.vmem [shape: f32[2,8,8], index: 1, kind: input, shape index: {}]
  %s2 = inlined_call_operand.vmem [shape: f32[2,64,4], index: 2, kind: input, shape index: {}]
  %s3 = inlined_call_operand.vmem [shape: f32[8,32], index: 3, kind: input, shape index: {}]
  %s4 = inlined_call_operand.vmem [shape: f32[5,16], index: 4, kind: input, shape index: {}]
  %s5 = inlined_call_operand.vmem [shape: f32[25,8], index: 5, kind: input, shape index: {}]
  %s6 = inlined_call_operand.vmem [shape: f32[17,128], index: 6, kind: input, shape index: {}]
  %s7 = inlined_call_operand.hbm [shape: f32[2,128], index: 7, kind: output, shape index: {}]
  %s8 = sld [smem:[#allocation0]]
  $region38: #{tpu_custom_call.1} parent=0
    _
  %s10 = ssub.s32 1, %s8
  %s11 = scalar_select 0, %s10, %s8
  $region1: #{tpu_custom_call.1} parent=0
    #allocation2 [shape = 'u8[1024]{0}', space=vmem, size = 0x400, scoped, tag = 'output window, operand 0, single buffered']
    #allocation3 [shape = 's32[1]{0}', space=sflag, size = 0x4, scoped, tag = 'scoped memory for tpu_custom_call.1']
    %12 = vsyncpa [#allocation3], 0
    // Predicated region
    $region2: #{tpu_custom_call.1} parent=1 // pred_check
      _
    $region3: #{tpu_custom_call.1} parent=1 // pred_check_branch
      %14 = sbr.rel (0) target = $region5
    $region4: #{tpu_custom_call.1} parent=1 // pred_region
      _
    $region5: #{tpu_custom_call.1} parent=1 // pred_fallthru
      _
    // Predicated region
    $region6: #{tpu_custom_call.1} parent=1 // pred_check
      _
    $region7: #{tpu_custom_call.1} parent=1 // pred_check_branch
      %16 = sbr.rel (0) target = $region9
    $region8: #{tpu_custom_call.1} parent=1 // pred_region
      _
    $region9: #{tpu_custom_call.1} parent=1 // pred_fallthru
      _
    // Predicated region
    $region10: #{tpu_custom_call.1} parent=1 // pred_check
      _
    $region11: #{tpu_custom_call.1} parent=1 // pred_check_branch
      %18 = sbr.rel (0) target = $region13
    $region12: #{tpu_custom_call.1} parent=1 // pred_region
      _
    $region13: #{tpu_custom_call.1} parent=1 // pred_fallthru
      _
    // Predicated region
    $region14: #{tpu_custom_call.1} parent=1 // pred_check
      _
    $region15: #{tpu_custom_call.1} parent=1 // pred_check_branch
      %20 = sbr.rel (0) target = $region17
    $region16: #{tpu_custom_call.1} parent=1 // pred_region
      _
    $region17: #{tpu_custom_call.1} parent=1 // pred_fallthru
      _
    // Predicated region
    $region18: #{tpu_custom_call.1} parent=1 // pred_check
      _
    $region19: #{tpu_custom_call.1} parent=1 // pred_check_branch
      %22 = sbr.rel (0) target = $region21
    $region20: #{tpu_custom_call.1} parent=1 // pred_region
      _
    $region21: #{tpu_custom_call.1} parent=1 // pred_fallthru
      _
    // Predicated region
    $region22: #{tpu_custom_call.1} parent=1 // pred_check
      _
    $region23: #{tpu_custom_call.1} parent=1 // pred_check_branch
      %24 = sbr.rel (0) target = $region25
    $region24: #{tpu_custom_call.1} parent=1 // pred_region
      _
    $region25: #{tpu_custom_call.1} parent=1 // pred_fallthru
      _
    // Predicated region
    $region26: #{tpu_custom_call.1} parent=1 // pred_check
      _
    $region27: #{tpu_custom_call.1} parent=1 // pred_check_branch
      %26 = sbr.rel (0) target = $region29
    $region28: #{tpu_custom_call.1} parent=1 // pred_region
      _
    $region29: #{tpu_custom_call.1} parent=1 // pred_fallthru
      _
    %v27 = vld [vmem:[%s0] sm:$0xff]
    %v28 = vld [vmem:[%s0 + $0x8] sm:$0xff]
    %v29 = vld [vmem:[%s1] sm:$0xff]
    %v30 = vld [vmem:[%s1 + $0x8] sm:$0xff]
    %v31 = vld [vmem:[%s2] sm:$0xff]
    %v32 = vld [vmem:[%s2 + $0x8] sm:$0xff]
    %v33 = vld [vmem:[%s2 + $0x10] sm:$0xff]
    %v34 = vld [vmem:[%s2 + $0x18] sm:$0xff]
    %v35 = vld [vmem:[%s2 + $0x20] sm:$0xff]
    %v36 = vld [vmem:[%s2 + $0x28] sm:$0xff]
    %v37 = vld [vmem:[%s2 + $0x30] sm:$0xff]
    %v38 = vld [vmem:[%s2 + $0x38] sm:$0xff]
    %v39 = vld [vmem:[%s2 + $0x40] sm:$0xff]
    %v40 = vld [vmem:[%s2 + $0x48] sm:$0xff]
    %v41 = vld [vmem:[%s2 + $0x50] sm:$0xff]
    %v42 = vld [vmem:[%s2 + $0x58] sm:$0xff]
    %v43 = vld [vmem:[%s2 + $0x60] sm:$0xff]
    %v44 = vld [vmem:[%s2 + $0x68] sm:$0xff]
    %v45 = vld [vmem:[%s2 + $0x70] sm:$0xff]
    %v46 = vld [vmem:[%s2 + $0x78] sm:$0xff]
    %v47 = vld [vmem:[%s3] sm:$0xff]
    %v48 = vld [vmem:[%s4] sm:$0xf]
    %v49 = vld [vmem:[%s4 + $0x4] sm:$0x1]
    %v50 = vld [vmem:[%s5] sm:$0xff]
    %v51 = vld [vmem:[%s5 + $0x8] sm:$0xff]
    %v52 = vld [vmem:[%s5 + $0x10] sm:$0xff]
    %v53 = vld [vmem:[%s5 + $0x18] sm:$0x1]
    %v54 = vld [vmem:[%s6] sm:$0xff]
    %v55 = vld [vmem:[%s6 + $0x8] sm:$0xff]
    %v56 = vld [vmem:[%s6 + $0x10] sm:$0x1]
    %vm57 = vcmp.ne.f32.partialorder %v27, 0.0
    %vm58 = vcmp.ne.f32.partialorder %v28, 0.0
    %v59 = vsel %vm57, 1, 0
    %v60 = vsel %vm58, 1, 0
    %v61 = vcvt.s32.f32 %v59
    %v62 = vcvt.s32.f32 %v60
    %v63 = vlaneseq
    %v64 = vshrl.u32 %v63, 7
    %v65 = vsub.s32 0, %v64
    %v66 = vrot.slane %v61, %v65
    %68 = vbcast.lane.b32.xlu0 %v66, 256
    %v69 = vpop.permute.xlu0 %68
    %v70 = vlaneseq
    %v71 = vshrl.u32 %v70, 7
    %v72 = vsub.s32 1, %v71
    %v73 = vrot.slane %v61, %v72
    %75 = vbcast.lane.b32.xlu0 %v73, 256
    %v76 = vpop.permute.xlu0 %75
    %v77 = vlaneseq
    %v78 = vshrl.u32 %v77, 7
    %v79 = vsub.s32 2, %v78
    %v80 = vrot.slane %v61, %v79
    %82 = vbcast.lane.b32.xlu0 %v80, 256
    %v83 = vpop.permute.xlu0 %82
    %v84 = vlaneseq
    %v85 = vshrl.u32 %v84, 7
    %v86 = vsub.s32 3, %v85
    %v87 = vrot.slane %v61, %v86
    %89 = vbcast.lane.b32.xlu0 %v87, 256
    %v90 = vpop.permute.xlu0 %89
    %v91 = vlaneseq
    %v92 = vshrl.u32 %v91, 7
    %v93 = vsub.s32 4, %v92
    %v94 = vrot.slane %v61, %v93
    %96 = vbcast.lane.b32.xlu0 %v94, 256
    %v97 = vpop.permute.xlu0 %96
    %v98 = vlaneseq
    %v99 = vshrl.u32 %v98, 7
    %v100 = vsub.s32 5, %v99
    %v101 = vrot.slane %v61, %v100
    %103 = vbcast.lane.b32.xlu0 %v101, 256
    %v104 = vpop.permute.xlu0 %103
    %v105 = vlaneseq
    %v106 = vshrl.u32 %v105, 7
    %v107 = vsub.s32 6, %v106
    %v108 = vrot.slane %v61, %v107
    %110 = vbcast.lane.b32.xlu0 %v108, 256
    %v111 = vpop.permute.xlu0 %110
    %v112 = vlaneseq
    %v113 = vshrl.u32 %v112, 7
    %v114 = vsub.s32 7, %v113
    %v115 = vrot.slane %v61, %v114
    %117 = vbcast.lane.b32.xlu0 %v115, 256
    %v118 = vpop.permute.xlu0 %117
    %v119 = vlaneseq
    %v120 = vshrl.u32 %v119, 7
    %v121 = vsub.s32 0, %v120
    %v122 = vrot.slane %v62, %v121
    %124 = vbcast.lane.b32.xlu0 %v122, 256
    %v125 = vpop.permute.xlu0 %124
    %v126 = vlaneseq
    %v127 = vshrl.u32 %v126, 7
    %v128 = vsub.s32 1, %v127
    %v129 = vrot.slane %v62, %v128
    %131 = vbcast.lane.b32.xlu0 %v129, 256
    %v132 = vpop.permute.xlu0 %131
    %v133 = vlaneseq
    %v134 = vshrl.u32 %v133, 7
    %v135 = vsub.s32 2, %v134
    %v136 = vrot.slane %v62, %v135
    %138 = vbcast.lane.b32.xlu0 %v136, 256
    %v139 = vpop.permute.xlu0 %138
    %v140 = vlaneseq
    %v141 = vshrl.u32 %v140, 7
    %v142 = vsub.s32 3, %v141
    %v143 = vrot.slane %v62, %v142
    %145 = vbcast.lane.b32.xlu0 %v143, 256
    %v146 = vpop.permute.xlu0 %145
    %v147 = vlaneseq
    %v148 = vshrl.u32 %v147, 7
    %v149 = vsub.s32 4, %v148
    %v150 = vrot.slane %v62, %v149
    %152 = vbcast.lane.b32.xlu0 %v150, 256
    %v153 = vpop.permute.xlu0 %152
    %v154 = vlaneseq
    %v155 = vshrl.u32 %v154, 7
    %v156 = vsub.s32 5, %v155
    %v157 = vrot.slane %v62, %v156
    %159 = vbcast.lane.b32.xlu0 %v157, 256
    %v160 = vpop.permute.xlu0 %159
    %v161 = vlaneseq
    %v162 = vshrl.u32 %v161, 7
    %v163 = vsub.s32 6, %v162
    %v164 = vrot.slane %v62, %v163
    %166 = vbcast.lane.b32.xlu0 %v164, 256
    %v167 = vpop.permute.xlu0 %166
    %v168 = vlaneseq
    %v169 = vshrl.u32 %v168, 7
    %v170 = vsub.s32 7, %v169
    %v171 = vrot.slane %v62, %v170
    %173 = vbcast.lane.b32.xlu0 %v171, 256
    %v174 = vpop.permute.xlu0 %173
    %vm175 = vcmask 64512
    %v176 = vsel %vm175, %v27, 0.0
    %177 = vadd.xlane.f32.xlu0 %v176
    %v178 = vpop.xlane.xlu0 %177
    %v179 = vsel %vm175, %v28, 0.0
    %180 = vadd.xlane.f32.xlu0 %v179
    %v181 = vpop.xlane.xlu0 %180
    %vm182 = vcmp.ne.f32.partialorder %v178, 0.0
    %vm183 = vcmp.ne.f32.partialorder %v181, 0.0
    %v184 = vsel %vm182, 1, 0
    %v185 = vsel %vm183, 1, 0
    %vm186 = vcmp.eq.s32.totalorder %v184, 1
    %vm187 = vcmp.eq.s32.totalorder %v185, 1
    %v188 = vlaneseq
    %v189 = vshrl.u32 %v188, 7
    %v190 = vsub.s32 0, %v189
    %v191 = vrot.slane %v49, %v190
    %vm192 = vcmask 31744
    %v194 = vsel %vm192, %v31, 0
    %v197 = vsel %vm192, %v32, 0
    %v200 = vsel %vm192, %v33, 0
    %v203 = vsel %vm192, %v34, 0
    %v206 = vsel %vm192, %v35, 0
    %v209 = vsel %vm192, %v36, 0
    %v212 = vsel %vm192, %v37, 0
    %v215 = vsel %vm192, %v38, 0
    %v218 = vsel %vm192, %v39, 0
    %v221 = vsel %vm192, %v40, 0
    %v224 = vsel %vm192, %v41, 0
    %v227 = vsel %vm192, %v42, 0
    %v230 = vsel %vm192, %v43, 0
    %v233 = vsel %vm192, %v44, 0
    %v236 = vsel %vm192, %v45, 0
    %v239 = vsel %vm192, %v46, 0
    %vm241 = vcmask 1043456
    %v243 = vsel %vm241, %v48, 0
    %245 = vmatprep.subr.mxu0 0.0
    %246 = vmatpush1.msra.mxu0 0.0
    %247 = vmatprep.subr.mxu0 0.0
    %248 = vmatpush1.msra.mxu0 0.0
    %249 = vmatprep.subr.mxu0 0.0
    %250 = vmatpush1.msra.mxu0 0.0
    %251 = vmatprep.subr.mxu0 0.0
    %252 = vmatpush1.msra.mxu0 0.0
    %253 = vmatprep.subr.mxu0 0.0
    %254 = vmatpush1.msra.mxu0 0.0
    %255 = vmatprep.subr.mxu0 0.0
    %256 = vmatpush1.msra.mxu0 0.0
    %257 = vmatprep.subr.mxu0 0.0
    %258 = vmatpush1.msra.mxu0 0.0
    %259 = vmatprep.subr.mxu0 0.0
    %260 = vmatpush1.msra.mxu0 0.0
    %261 = vmatprep.subr.mxu0 0.0
    %262 = vmatpush1.msra.mxu0 0.0
    %263 = vmatprep.subr.mxu0 0.0
    %264 = vmatpush1.msra.mxu0 0.0
    %265 = vmatprep.subr.mxu0 0.0
    %266 = vmatpush1.msra.mxu0 0.0
    %267 = vmatprep.subr.mxu0 0.0
    %268 = vmatpush1.msra.mxu0 0.0
    %269 = vmatprep.subr.mxu0 0.0
    %270 = vmatpush1.msra.mxu0 0.0
    %271 = vmatprep.subr.mxu0 0.0
    %272 = vmatpush1.msra.mxu0 0.0
    %273 = vmatprep.subr.mxu0 0.0
    %274 = vmatpush1.msra.mxu0 0.0
    %275 = vmatprep.subr.mxu0 0.0
    %276 = vmatpush1.msra.mxu0 %v243
    %277 = vmatprep.subr.mxu0 0.0
    %278 = vmatpush2.msra.mxu0 0.0
    %279 = vmatprep.subr.mxu0 0.0
    %280 = vmatpush2.msra.mxu0 0.0
    %281 = vmatprep.subr.mxu0 0.0
    %282 = vmatpush2.msra.mxu0 0.0
    %283 = vmatprep.subr.mxu0 0.0
    %284 = vmatpush2.msra.mxu0 0.0
    %285 = vmatprep.subr.mxu0 0.0
    %286 = vmatpush2.msra.mxu0 0.0
    %287 = vmatprep.subr.mxu0 0.0
    %288 = vmatpush2.msra.mxu0 0.0
    %289 = vmatprep.subr.mxu0 0.0
    %290 = vmatpush2.msra.mxu0 0.0
    %291 = vmatprep.subr.mxu0 0.0
    %292 = vmatpush2.msra.mxu0 0.0
    %293 = vmatprep.subr.mxu0 0.0
    %294 = vmatpush2.msra.mxu0 0.0
    %295 = vmatprep.subr.mxu0 0.0
    %296 = vmatpush2.msra.mxu0 0.0
    %297 = vmatprep.subr.mxu0 0.0
    %298 = vmatpush2.msra.mxu0 0.0
    %299 = vmatprep.subr.mxu0 0.0
    %300 = vmatpush2.msra.mxu0 0.0
    %301 = vmatprep.subr.mxu0 0.0
    %302 = vmatpush2.msra.mxu0 0.0
    %303 = vmatprep.subr.mxu0 0.0
    %304 = vmatpush2.msra.mxu0 0.0
    %305 = vmatprep.subr.mxu0 0.0
    %306 = vmatpush2.msra.mxu0 0.0
    %307 = vmatprep.subr.mxu0 0.0
    %308 = vmatpush2.msra.mxu0 0.0
    %309 = vmatprep.mubr.f32.mxu0 0.0
    %310 = vmatmul.mubr.f32.gmra.mxu0 %v194
    %v311 = vpop.f32.mrf.mxu0
    %v312 = vadd.f32 %v191, %v311
    %v313 = vpop.f32.mrf.mxu0
    %314 = vmatprep.mubr.f32.mxu0 0.0
    %315 = vmatmul.mubr.f32.gmra.mxu0 %v197
    %v316 = vpop.f32.mrf.mxu0
    %v317 = vadd.f32 %v191, %v316
    %v318 = vpop.f32.mrf.mxu0
    %319 = vmatprep.mubr.f32.mxu0 0.0
    %320 = vmatmul.mubr.f32.gmra.mxu0 %v200
    %v321 = vpop.f32.mrf.mxu0
    %v322 = vadd.f32 %v191, %v321
    %v323 = vpop.f32.mrf.mxu0
    %324 = vmatprep.mubr.f32.mxu0 0.0
    %325 = vmatmul.mubr.f32.gmra.mxu0 %v203
    %v326 = vpop.f32.mrf.mxu0
    %v327 = vadd.f32 %v191, %v326
    %v328 = vpop.f32.mrf.mxu0
    %329 = vmatprep.mubr.f32.mxu0 0.0
    %330 = vmatmul.mubr.f32.gmra.mxu0 %v206
    %v331 = vpop.f32.mrf.mxu0
    %v332 = vadd.f32 %v191, %v331
    %v333 = vpop.f32.mrf.mxu0
    %334 = vmatprep.mubr.f32.mxu0 0.0
    %335 = vmatmul.mubr.f32.gmra.mxu0 %v209
    %v336 = vpop.f32.mrf.mxu0
    %v337 = vadd.f32 %v191, %v336
    %v338 = vpop.f32.mrf.mxu0
    %339 = vmatprep.mubr.f32.mxu0 0.0
    %340 = vmatmul.mubr.f32.gmra.mxu0 %v212
    %v341 = vpop.f32.mrf.mxu0
    %v342 = vadd.f32 %v191, %v341
    %v343 = vpop.f32.mrf.mxu0
    %344 = vmatprep.mubr.f32.mxu0 0.0
    %345 = vmatmul.mubr.f32.gmra.mxu0 %v215
    %v346 = vpop.f32.mrf.mxu0
    %v347 = vadd.f32 %v191, %v346
    %v348 = vpop.f32.mrf.mxu0
    %349 = vmatprep.mubr.f32.mxu0 0.0
    %350 = vmatmul.mubr.f32.gmra.mxu0 %v218
    %v351 = vpop.f32.mrf.mxu0
    %v352 = vadd.f32 %v191, %v351
    %v353 = vpop.f32.mrf.mxu0
    %354 = vmatprep.mubr.f32.mxu0 0.0
    %355 = vmatmul.mubr.f32.gmra.mxu0 %v221
    %v356 = vpop.f32.mrf.mxu0
    %v357 = vadd.f32 %v191, %v356
    %v358 = vpop.f32.mrf.mxu0
    %359 = vmatprep.mubr.f32.mxu0 0.0
    %360 = vmatmul.mubr.f32.gmra.mxu0 %v224
    %v361 = vpop.f32.mrf.mxu0
    %v362 = vadd.f32 %v191, %v361
    %v363 = vpop.f32.mrf.mxu0
    %364 = vmatprep.mubr.f32.mxu0 0.0
    %365 = vmatmul.mubr.f32.gmra.mxu0 %v227
    %v366 = vpop.f32.mrf.mxu0
    %v367 = vadd.f32 %v191, %v366
    %v368 = vpop.f32.mrf.mxu0
    %369 = vmatprep.mubr.f32.mxu0 0.0
    %370 = vmatmul.mubr.f32.gmra.mxu0 %v230
    %v371 = vpop.f32.mrf.mxu0
    %v372 = vadd.f32 %v191, %v371
    %v373 = vpop.f32.mrf.mxu0
    %374 = vmatprep.mubr.f32.mxu0 0.0
    %375 = vmatmul.mubr.f32.gmra.mxu0 %v233
    %v376 = vpop.f32.mrf.mxu0
    %v377 = vadd.f32 %v191, %v376
    %v378 = vpop.f32.mrf.mxu0
    %379 = vmatprep.mubr.f32.mxu0 0.0
    %380 = vmatmul.mubr.f32.gmra.mxu0 %v236
    %v381 = vpop.f32.mrf.mxu0
    %v382 = vadd.f32 %v191, %v381
    %v383 = vpop.f32.mrf.mxu0
    %384 = vmatprep.mubr.f32.mxu0 0.0
    %385 = vmatmul.mubr.f32.gmra.mxu0 %v239
    %v386 = vpop.f32.mrf.mxu0
    %v387 = vadd.f32 %v191, %v386
    %v388 = vpop.f32.mrf.mxu0
    %389 = vdwg.mxu0
    %v391 = vsel %vm175, %v29, 0
    %v394 = vsel %vm175, %v30, 0
    %396 = vmatprep.subr.mxu0 0.0
    %397 = vmatpush1.msra.mxu0 0.0
    %398 = vmatprep.subr.mxu0 0.0
    %399 = vmatpush1.msra.mxu0 0.0
    %400 = vmatprep.subr.mxu0 0.0
    %401 = vmatpush1.msra.mxu0 0.0
    %402 = vmatprep.subr.mxu0 0.0
    %403 = vmatpush1.msra.mxu0 0.0
    %404 = vmatprep.subr.mxu0 0.0
    %405 = vmatpush1.msra.mxu0 0.0
    %406 = vmatprep.subr.mxu0 0.0
    %407 = vmatpush1.msra.mxu0 0.0
    %408 = vmatprep.subr.mxu0 0.0
    %409 = vmatpush1.msra.mxu0 0.0
    %410 = vmatprep.subr.mxu0 0.0
    %411 = vmatpush1.msra.mxu0 0.0
    %412 = vmatprep.subr.mxu0 0.0
    %413 = vmatpush1.msra.mxu0 0.0
    %414 = vmatprep.subr.mxu0 0.0
    %415 = vmatpush1.msra.mxu0 0.0
    %416 = vmatprep.subr.mxu0 0.0
    %417 = vmatpush1.msra.mxu0 0.0
    %418 = vmatprep.subr.mxu0 0.0
    %419 = vmatpush1.msra.mxu0 0.0
    %420 = vmatprep.subr.mxu0 0.0
    %421 = vmatpush1.msra.mxu0 0.0
    %422 = vmatprep.subr.mxu0 0.0
    %423 = vmatpush1.msra.mxu0 0.0
    %424 = vmatprep.subr.mxu0 0.0
    %425 = vmatpush1.msra.mxu0 0.0
    %426 = vmatprep.subr.mxu0 0.0
    %427 = vmatpush1.msra.mxu0 %v47
    %428 = vmatprep.subr.mxu0 0.0
    %429 = vmatpush2.msra.mxu0 0.0
    %430 = vmatprep.subr.mxu0 0.0
    %431 = vmatpush2.msra.mxu0 0.0
    %432 = vmatprep.subr.mxu0 0.0
    %433 = vmatpush2.msra.mxu0 0.0
    %434 = vmatprep.subr.mxu0 0.0
    %435 = vmatpush2.msra.mxu0 0.0
    %436 = vmatprep.subr.mxu0 0.0
    %437 = vmatpush2.msra.mxu0 0.0
    %438 = vmatprep.subr.mxu0 0.0
    %439 = vmatpush2.msra.mxu0 0.0
    %440 = vmatprep.subr.mxu0 0.0
    %441 = vmatpush2.msra.mxu0 0.0
    %442 = vmatprep.subr.mxu0 0.0
    %443 = vmatpush2.msra.mxu0 0.0
    %444 = vmatprep.subr.mxu0 0.0
    %445 = vmatpush2.msra.mxu0 0.0
    %446 = vmatprep.subr.mxu0 0.0
    %447 = vmatpush2.msra.mxu0 0.0
    %448 = vmatprep.subr.mxu0 0.0
    %449 = vmatpush2.msra.mxu0 0.0
    %450 = vmatprep.subr.mxu0 0.0
    %451 = vmatpush2.msra.mxu0 0.0
    %452 = vmatprep.subr.mxu0 0.0
    %453 = vmatpush2.msra.mxu0 0.0
    %454 = vmatprep.subr.mxu0 0.0
    %455 = vmatpush2.msra.mxu0 0.0
    %456 = vmatprep.subr.mxu0 0.0
    %457 = vmatpush2.msra.mxu0 0.0
    %458 = vmatprep.subr.mxu0 0.0
    %459 = vmatpush2.msra.mxu0 0.0
    %460 = vmatprep.mubr.f32.mxu0 0.0
    %461 = vmatmul.mubr.f32.gmra.mxu0 %v391
    %v462 = vpop.f32.mrf.mxu0
    %v463 = vadd.f32 0.0, %v462
    %v464 = vpop.f32.mrf.mxu0
    %465 = vmatprep.mubr.f32.mxu0 0.0
    %466 = vmatmul.mubr.f32.gmra.mxu0 %v394
    %v467 = vpop.f32.mrf.mxu0
    %v468 = vadd.f32 0.0, %v467
    %v469 = vpop.f32.mrf.mxu0
    %470 = vdwg.mxu0
    %v473 = vcombine.high %v463, %v463
    %v475 = vunpack.c.l.s4 1966171168
    %v476 = vunpack.c.0.s8 %v475
    %v477 = vlaneseq
    %v478 = vshrl.u32 %v477, 7
    %v479 = vsub.s32 %v476, %v478
    %v480 = vrot.slane %v463, %v479
    %v482 = vunpack.c.l.s4 1966171168
    %v483 = vunpack.c.0.s8 %v482
    %v484 = vlaneseq
    %v485 = vshrl.u32 %v484, 7
    %v486 = vsub.s32 %v483, %v485
    %v487 = vrot.slane %v473, %v486
    %v488 = vcombine.high %v480, %v480
    %v489 = vcombine.high %v487, %v487
    %v491 = vunpack.c.l.s4 1966171168
    %v492 = vunpack.c.0.s8 %v491
    %v493 = vlaneseq
    %v494 = vshrl.u32 %v493, 7
    %v495 = vsub.s32 %v492, %v494
    %v496 = vrot.slane %v480, %v495
    %v498 = vunpack.c.l.s4 1966171168
    %v499 = vunpack.c.0.s8 %v498
    %v500 = vlaneseq
    %v501 = vshrl.u32 %v500, 7
    %v502 = vsub.s32 %v499, %v501
    %v503 = vrot.slane %v487, %v502
    %v505 = vunpack.c.l.s4 1966171168
    %v506 = vunpack.c.0.s8 %v505
    %v507 = vlaneseq
    %v508 = vshrl.u32 %v507, 7
    %v509 = vsub.s32 %v506, %v508
    %v510 = vrot.slane %v488, %v509
    %v512 = vunpack.c.l.s4 1966171168
    %v513 = vunpack.c.0.s8 %v512
    %v514 = vlaneseq
    %v515 = vshrl.u32 %v514, 7
    %v516 = vsub.s32 %v513, %v515
    %v517 = vrot.slane %v489, %v516
    %v518 = vcombine.high %v496, %v496
    %v519 = vcombine.high %v503, %v503
    %v520 = vcombine.high %v510, %v510
    %v521 = vcombine.high %v517, %v517
    %v522 = vcombine.high %v468, %v468
    %v524 = vunpack.c.l.s4 1966171168
    %v525 = vunpack.c.0.s8 %v524
    %v526 = vlaneseq
    %v527 = vshrl.u32 %v526, 7
    %v528 = vsub.s32 %v525, %v527
    %v529 = vrot.slane %v468, %v528
    %v531 = vunpack.c.l.s4 1966171168
    %v532 = vunpack.c.0.s8 %v531
    %v533 = vlaneseq
    %v534 = vshrl.u32 %v533, 7
    %v535 = vsub.s32 %v532, %v534
    %v536 = vrot.slane %v522, %v535
    %v537 = vcombine.high %v529, %v529
    %v538 = vcombine.high %v536, %v536
    %v540 = vunpack.c.l.s4 1966171168
    %v541 = vunpack.c.0.s8 %v540
    %v542 = vlaneseq
    %v543 = vshrl.u32 %v542, 7
    %v544 = vsub.s32 %v541, %v543
    %v545 = vrot.slane %v529, %v544
    %v547 = vunpack.c.l.s4 1966171168
    %v548 = vunpack.c.0.s8 %v547
    %v549 = vlaneseq
    %v550 = vshrl.u32 %v549, 7
    %v551 = vsub.s32 %v548, %v550
    %v552 = vrot.slane %v536, %v551
    %v554 = vunpack.c.l.s4 1966171168
    %v555 = vunpack.c.0.s8 %v554
    %v556 = vlaneseq
    %v557 = vshrl.u32 %v556, 7
    %v558 = vsub.s32 %v555, %v557
    %v559 = vrot.slane %v537, %v558
    %v561 = vunpack.c.l.s4 1966171168
    %v562 = vunpack.c.0.s8 %v561
    %v563 = vlaneseq
    %v564 = vshrl.u32 %v563, 7
    %v565 = vsub.s32 %v562, %v564
    %v566 = vrot.slane %v538, %v565
    %v567 = vcombine.high %v545, %v545
    %v568 = vcombine.high %v552, %v552
    %v569 = vcombine.high %v559, %v559
    %v570 = vcombine.high %v566, %v566
    %v571 = vlaneseq
    %v572 = vshrl.u32 %v571, 7
    %v573 = vsub.s32 0, %v572
    %v574 = vrot.slane %v496, %v573
    %v575 = vlaneseq
    %v576 = vshrl.u32 %v575, 7
    %v577 = vsub.s32 0, %v576
    %v578 = vrot.slane %v510, %v577
    %v579 = vlaneseq
    %v580 = vshrl.u32 %v579, 7
    %v581 = vsub.s32 0, %v580
    %v582 = vrot.slane %v518, %v581
    %v583 = vlaneseq
    %v584 = vshrl.u32 %v583, 7
    %v585 = vsub.s32 0, %v584
    %v586 = vrot.slane %v520, %v585
    %v587 = vlaneseq
    %v588 = vshrl.u32 %v587, 7
    %v589 = vsub.s32 0, %v588
    %v590 = vrot.slane %v503, %v589
    %v591 = vlaneseq
    %v592 = vshrl.u32 %v591, 7
    %v593 = vsub.s32 0, %v592
    %v594 = vrot.slane %v517, %v593
    %v595 = vlaneseq
    %v596 = vshrl.u32 %v595, 7
    %v597 = vsub.s32 0, %v596
    %v598 = vrot.slane %v519, %v597
    %v599 = vlaneseq
    %v600 = vshrl.u32 %v599, 7
    %v601 = vsub.s32 0, %v600
    %v602 = vrot.slane %v521, %v601
    %v603 = vlaneseq
    %v604 = vshrl.u32 %v603, 7
    %v605 = vsub.s32 0, %v604
    %v606 = vrot.slane %v545, %v605
    %v607 = vlaneseq
    %v608 = vshrl.u32 %v607, 7
    %v609 = vsub.s32 0, %v608
    %v610 = vrot.slane %v559, %v609
    %v611 = vlaneseq
    %v612 = vshrl.u32 %v611, 7
    %v613 = vsub.s32 0, %v612
    %v614 = vrot.slane %v567, %v613
    %v615 = vlaneseq
    %v616 = vshrl.u32 %v615, 7
    %v617 = vsub.s32 0, %v616
    %v618 = vrot.slane %v569, %v617
    %v619 = vlaneseq
    %v620 = vshrl.u32 %v619, 7
    %v621 = vsub.s32 0, %v620
    %v622 = vrot.slane %v552, %v621
    %v623 = vlaneseq
    %v624 = vshrl.u32 %v623, 7
    %v625 = vsub.s32 0, %v624
    %v626 = vrot.slane %v566, %v625
    %v627 = vlaneseq
    %v628 = vshrl.u32 %v627, 7
    %v629 = vsub.s32 0, %v628
    %v630 = vrot.slane %v568, %v629
    %v631 = vlaneseq
    %v632 = vshrl.u32 %v631, 7
    %v633 = vsub.s32 0, %v632
    %v634 = vrot.slane %v570, %v633
    %651 = vrot.lane.b32.xlu0 %v463, 112
    %v652 = vpop.permute.xlu0 %651
    %653 = vrot.lane.b32.xlu0 %v468, 112
    %v654 = vpop.permute.xlu0 %653
    %v657 = vadd.f32 %v574, %v652
    %v658 = vadd.f32 %v578, %v652
    %v659 = vadd.f32 %v582, %v652
    %v660 = vadd.f32 %v586, %v652
    %v661 = vadd.f32 %v590, %v652
    %v662 = vadd.f32 %v594, %v652
    %v663 = vadd.f32 %v598, %v652
    %v664 = vadd.f32 %v602, %v652
    %v665 = vadd.f32 %v606, %v654
    %v666 = vadd.f32 %v610, %v654
    %v667 = vadd.f32 %v614, %v654
    %v668 = vadd.f32 %v618, %v654
    %v669 = vadd.f32 %v622, %v654
    %v670 = vadd.f32 %v626, %v654
    %v671 = vadd.f32 %v630, %v654
    %v672 = vadd.f32 %v634, %v654
    %v673 = vadd.f32 %v657, %v312
    %v674 = vadd.f32 %v658, %v317
    %v675 = vadd.f32 %v659, %v322
    %v676 = vadd.f32 %v660, %v327
    %v677 = vadd.f32 %v661, %v332
    %v678 = vadd.f32 %v662, %v337
    %v679 = vadd.f32 %v663, %v342
    %v680 = vadd.f32 %v664, %v347
    %v681 = vadd.f32 %v665, %v352
    %v682 = vadd.f32 %v666, %v357
    %v683 = vadd.f32 %v667, %v362
    %v684 = vadd.f32 %v668, %v367
    %v685 = vadd.f32 %v669, %v372
    %v686 = vadd.f32 %v670, %v377
    %v687 = vadd.f32 %v671, %v382
    %v688 = vadd.f32 %v672, %v387
    %v689 = vmax.f32 %v673, 0.0
    %v690 = vmax.f32 %v674, 0.0
    %v691 = vmax.f32 %v675, 0.0
    %v692 = vmax.f32 %v676, 0.0
    %v693 = vmax.f32 %v677, 0.0
    %v694 = vmax.f32 %v678, 0.0
    %v695 = vmax.f32 %v679, 0.0
    %v696 = vmax.f32 %v680, 0.0
    %v697 = vmax.f32 %v681, 0.0
    %v698 = vmax.f32 %v682, 0.0
    %v699 = vmax.f32 %v683, 0.0
    %v700 = vmax.f32 %v684, 0.0
    %v701 = vmax.f32 %v685, 0.0
    %v702 = vmax.f32 %v686, 0.0
    %v703 = vmax.f32 %v687, 0.0
    %v704 = vmax.f32 %v688, 0.0
    %v705 = vmul.f32 %v69, %v689
    %v706 = vmul.f32 %v76, %v690
    %v707 = vmul.f32 %v83, %v691
    %v708 = vmul.f32 %v90, %v692
    %v709 = vmul.f32 %v97, %v693
    %v710 = vmul.f32 %v104, %v694
    %v711 = vmul.f32 %v111, %v695
    %v712 = vmul.f32 %v118, %v696
    %v713 = vmul.f32 %v125, %v697
    %v714 = vmul.f32 %v132, %v698
    %v715 = vmul.f32 %v139, %v699
    %v716 = vmul.f32 %v146, %v700
    %v717 = vmul.f32 %v153, %v701
    %v718 = vmul.f32 %v160, %v702
    %v719 = vmul.f32 %v167, %v703
    %v720 = vmul.f32 %v174, %v704
    %vm721 = vcmask 130048
    %v722 = vsel %vm721, %v705, 0.0
    %v723 = vrot.slane %v722, 4
    %v724 = vadd.f32 %v722, %v723
    %v725 = vrot.slane %v724, 2
    %v726 = vadd.f32 %v724, %v725
    %v727 = vrot.slane %v726, 1
    %v728 = vadd.f32 %v726, %v727
    %v729 = vsel %vm721, %v706, 0.0
    %v730 = vrot.slane %v729, 4
    %v731 = vadd.f32 %v729, %v730
    %v732 = vrot.slane %v731, 2
    %v733 = vadd.f32 %v731, %v732
    %v734 = vrot.slane %v733, 1
    %v735 = vadd.f32 %v733, %v734
    %v736 = vsel %vm721, %v707, 0.0
    %v737 = vrot.slane %v736, 4
    %v738 = vadd.f32 %v736, %v737
    %v739 = vrot.slane %v738, 2
    %v740 = vadd.f32 %v738, %v739
    %v741 = vrot.slane %v740, 1
    %v742 = vadd.f32 %v740, %v741
    %v743 = vsel %vm721, %v708, 0.0
    %v744 = vrot.slane %v743, 4
    %v745 = vadd.f32 %v743, %v744
    %v746 = vrot.slane %v745, 2
    %v747 = vadd.f32 %v745, %v746
    %v748 = vrot.slane %v747, 1
    %v749 = vadd.f32 %v747, %v748
    %v750 = vsel %vm721, %v709, 0.0
    %v751 = vrot.slane %v750, 4
    %v752 = vadd.f32 %v750, %v751
    %v753 = vrot.slane %v752, 2
    %v754 = vadd.f32 %v752, %v753
    %v755 = vrot.slane %v754, 1
    %v756 = vadd.f32 %v754, %v755
    %v757 = vsel %vm721, %v710, 0.0
    %v758 = vrot.slane %v757, 4
    %v759 = vadd.f32 %v757, %v758
    %v760 = vrot.slane %v759, 2
    %v761 = vadd.f32 %v759, %v760
    %v762 = vrot.slane %v761, 1
    %v763 = vadd.f32 %v761, %v762
    %v764 = vsel %vm721, %v711, 0.0
    %v765 = vrot.slane %v764, 4
    %v766 = vadd.f32 %v764, %v765
    %v767 = vrot.slane %v766, 2
    %v768 = vadd.f32 %v766, %v767
    %v769 = vrot.slane %v768, 1
    %v770 = vadd.f32 %v768, %v769
    %v771 = vsel %vm721, %v712, 0.0
    %v772 = vrot.slane %v771, 4
    %v773 = vadd.f32 %v771, %v772
    %v774 = vrot.slane %v773, 2
    %v775 = vadd.f32 %v773, %v774
    %v776 = vrot.slane %v775, 1
    %v777 = vadd.f32 %v775, %v776
    %v778 = vsel %vm721, %v713, 0.0
    %v779 = vrot.slane %v778, 4
    %v780 = vadd.f32 %v778, %v779
    %v781 = vrot.slane %v780, 2
    %v782 = vadd.f32 %v780, %v781
    %v783 = vrot.slane %v782, 1
    %v784 = vadd.f32 %v782, %v783
    %v785 = vsel %vm721, %v714, 0.0
    %v786 = vrot.slane %v785, 4
    %v787 = vadd.f32 %v785, %v786
    %v788 = vrot.slane %v787, 2
    %v789 = vadd.f32 %v787, %v788
    %v790 = vrot.slane %v789, 1
    %v791 = vadd.f32 %v789, %v790
    %v792 = vsel %vm721, %v715, 0.0
    %v793 = vrot.slane %v792, 4
    %v794 = vadd.f32 %v792, %v793
    %v795 = vrot.slane %v794, 2
    %v796 = vadd.f32 %v794, %v795
    %v797 = vrot.slane %v796, 1
    %v798 = vadd.f32 %v796, %v797
    %v799 = vsel %vm721, %v716, 0.0
    %v800 = vrot.slane %v799, 4
    %v801 = vadd.f32 %v799, %v800
    %v802 = vrot.slane %v801, 2
    %v803 = vadd.f32 %v801, %v802
    %v804 = vrot.slane %v803, 1
    %v805 = vadd.f32 %v803, %v804
    %v806 = vsel %vm721, %v717, 0.0
    %v807 = vrot.slane %v806, 4
    %v808 = vadd.f32 %v806, %v807
    %v809 = vrot.slane %v808, 2
    %v810 = vadd.f32 %v808, %v809
    %v811 = vrot.slane %v810, 1
    %v812 = vadd.f32 %v810, %v811
    %v813 = vsel %vm721, %v718, 0.0
    %v814 = vrot.slane %v813, 4
    %v815 = vadd.f32 %v813, %v814
    %v816 = vrot.slane %v815, 2
    %v817 = vadd.f32 %v815, %v816
    %v818 = vrot.slane %v817, 1
    %v819 = vadd.f32 %v817, %v818
    %v820 = vsel %vm721, %v719, 0.0
    %v821 = vrot.slane %v820, 4
    %v822 = vadd.f32 %v820, %v821
    %v823 = vrot.slane %v822, 2
    %v824 = vadd.f32 %v822, %v823
    %v825 = vrot.slane %v824, 1
    %v826 = vadd.f32 %v824, %v825
    %v827 = vsel %vm721, %v720, 0.0
    %v828 = vrot.slane %v827, 4
    %v829 = vadd.f32 %v827, %v828
    %v830 = vrot.slane %v829, 2
    %v831 = vadd.f32 %v829, %v830
    %v832 = vrot.slane %v831, 1
    %v833 = vadd.f32 %v831, %v832
    %vm850 = vcmask 1041409
    %v851 = vsel %vm850, %v735, %v728
    %vm852 = vcmask 1042434
    %v853 = vsel %vm852, %v742, %v851
    %vm854 = vcmask 1043459
    %v855 = vsel %vm854, %v749, %v853
    %vm856 = vcmask 1044484
    %v857 = vsel %vm856, %v756, %v855
    %vm858 = vcmask 1045509
    %v859 = vsel %vm858, %v763, %v857
    %vm860 = vcmask 1046534
    %v861 = vsel %vm860, %v770, %v859
    %vm862 = vcmask 1047559
    %v863 = vsel %vm862, %v777, %v861
    %v864 = vsel %vm850, %v791, %v784
    %v865 = vsel %vm852, %v798, %v864
    %v866 = vsel %vm854, %v805, %v865
    %v867 = vsel %vm856, %v812, %v866
    %v868 = vsel %vm858, %v819, %v867
    %v869 = vsel %vm860, %v826, %v868
    %v870 = vsel %vm862, %v833, %v869
    %871 = vrot.lane.b32.xlu0 %v863, 8
    %v872 = vpop.permute.xlu0 %871
    %873 = vrot.lane.b32.xlu0 %v870, 8
    %v874 = vpop.permute.xlu0 %873
    %v877 = vsel %vm175, %v29, %v872
    %v878 = vsel %vm175, %v30, %v874
    %v879 = vlaneseq
    %v880 = vshrl.u32 %v879, 7
    %v881 = vsub.s32 0, %v880
    %v882 = vrot.slane %v53, %v881
    %vm883 = vcmask 195584
    %v885 = vsel %vm883, %v877, 0
    %v888 = vsel %vm883, %v878, 0
    %890 = vmatprep.subr.mxu0 0.0
    %891 = vmatpush1.msra.mxu0 0.0
    %892 = vmatprep.subr.mxu0 0.0
    %893 = vmatpush1.msra.mxu0 0.0
    %894 = vmatprep.subr.mxu0 0.0
    %895 = vmatpush1.msra.mxu0 0.0
    %896 = vmatprep.subr.mxu0 0.0
    %897 = vmatpush1.msra.mxu0 0.0
    %898 = vmatprep.subr.mxu0 0.0
    %899 = vmatpush1.msra.mxu0 0.0
    %900 = vmatprep.subr.mxu0 0.0
    %901 = vmatpush1.msra.mxu0 0.0
    %902 = vmatprep.subr.mxu0 0.0
    %903 = vmatpush1.msra.mxu0 0.0
    %904 = vmatprep.subr.mxu0 0.0
    %905 = vmatpush1.msra.mxu0 0.0
    %906 = vmatprep.subr.mxu0 0.0
    %907 = vmatpush1.msra.mxu0 0.0
    %908 = vmatprep.subr.mxu0 0.0
    %909 = vmatpush1.msra.mxu0 0.0
    %910 = vmatprep.subr.mxu0 0.0
    %911 = vmatpush1.msra.mxu0 0.0
    %912 = vmatprep.subr.mxu0 0.0
    %913 = vmatpush1.msra.mxu0 0.0
    %914 = vmatprep.subr.mxu0 0.0
    %915 = vmatpush1.msra.mxu0 0.0
    %916 = vmatprep.subr.mxu0 0.0
    %917 = vmatpush1.msra.mxu0 %v52
    %918 = vmatprep.subr.mxu0 0.0
    %919 = vmatpush1.msra.mxu0 %v51
    %920 = vmatprep.subr.mxu0 0.0
    %921 = vmatpush1.msra.mxu0 %v50
    %922 = vmatprep.subr.mxu0 0.0
    %923 = vmatpush2.msra.mxu0 0.0
    %924 = vmatprep.subr.mxu0 0.0
    %925 = vmatpush2.msra.mxu0 0.0
    %926 = vmatprep.subr.mxu0 0.0
    %927 = vmatpush2.msra.mxu0 0.0
    %928 = vmatprep.subr.mxu0 0.0
    %929 = vmatpush2.msra.mxu0 0.0
    %930 = vmatprep.subr.mxu0 0.0
    %931 = vmatpush2.msra.mxu0 0.0
    %932 = vmatprep.subr.mxu0 0.0
    %933 = vmatpush2.msra.mxu0 0.0
    %934 = vmatprep.subr.mxu0 0.0
    %935 = vmatpush2.msra.mxu0 0.0
    %936 = vmatprep.subr.mxu0 0.0
    %937 = vmatpush2.msra.mxu0 0.0
    %938 = vmatprep.subr.mxu0 0.0
    %939 = vmatpush2.msra.mxu0 0.0
    %940 = vmatprep.subr.mxu0 0.0
    %941 = vmatpush2.msra.mxu0 0.0
    %942 = vmatprep.subr.mxu0 0.0
    %943 = vmatpush2.msra.mxu0 0.0
    %944 = vmatprep.subr.mxu0 0.0
    %945 = vmatpush2.msra.mxu0 0.0
    %946 = vmatprep.subr.mxu0 0.0
    %947 = vmatpush2.msra.mxu0 0.0
    %948 = vmatprep.subr.mxu0 0.0
    %949 = vmatpush2.msra.mxu0 0.0
    %950 = vmatprep.subr.mxu0 0.0
    %951 = vmatpush2.msra.mxu0 0.0
    %952 = vmatprep.subr.mxu0 0.0
    %953 = vmatpush2.msra.mxu0 0.0
    %954 = vmatprep.mubr.f32.mxu0 0.0
    %955 = vmatmul.mubr.f32.gmra.mxu0 %v885
    %v956 = vpop.f32.mrf.mxu0
    %v957 = vadd.f32 %v882, %v956
    %v958 = vpop.f32.mrf.mxu0
    %959 = vmatprep.mubr.f32.mxu0 0.0
    %960 = vmatmul.mubr.f32.gmra.mxu0 %v888
    %v961 = vpop.f32.mrf.mxu0
    %v962 = vadd.f32 %v882, %v961
    %v963 = vpop.f32.mrf.mxu0
    %964 = vdwg.mxu0
    %v965 = vtanh.pop %v957
    %v966 = vtanh.pop %v962
    %v967 = vsel %vm186, %v965, %v29
    %v968 = vsel %vm187, %v966, %v30
    %v970 = vsel %vm175, %v967, 0
    %v973 = vsel %vm175, %v968, 0
    %975 = vmatprep.subr.mxu0 0.0
    %976 = vmatpush1.msra.mxu0 0.0
    %977 = vmatprep.subr.mxu0 0.0
    %978 = vmatpush1.msra.mxu0 0.0
    %979 = vmatprep.subr.mxu0 0.0
    %980 = vmatpush1.msra.mxu0 0.0
    %981 = vmatprep.subr.mxu0 0.0
    %982 = vmatpush1.msra.mxu0 0.0
    %983 = vmatprep.subr.mxu0 0.0
    %984 = vmatpush1.msra.mxu0 0.0
    %985 = vmatprep.subr.mxu0 0.0
    %986 = vmatpush1.msra.mxu0 0.0
    %987 = vmatprep.subr.mxu0 0.0
    %988 = vmatpush1.msra.mxu0 0.0
    %989 = vmatprep.subr.mxu0 0.0
    %990 = vmatpush1.msra.mxu0 0.0
    %991 = vmatprep.subr.mxu0 0.0
    %992 = vmatpush1.msra.mxu0 0.0
    %993 = vmatprep.subr.mxu0 0.0
    %994 = vmatpush1.msra.mxu0 0.0
    %995 = vmatprep.subr.mxu0 0.0
    %996 = vmatpush1.msra.mxu0 0.0
    %997 = vmatprep.subr.mxu0 0.0
    %998 = vmatpush1.msra.mxu0 0.0
    %999 = vmatprep.subr.mxu0 0.0
    %1000 = vmatpush1.msra.mxu0 0.0
    %1001 = vmatprep.subr.mxu0 0.0
    %1002 = vmatpush1.msra.mxu0 0.0
    %1003 = vmatprep.subr.mxu0 0.0
    %1004 = vmatpush1.msra.mxu0 0.0
    %1005 = vmatprep.subr.mxu0 0.0
    %1006 = vmatpush1.msra.mxu0 %v47
    %1007 = vmatprep.subr.mxu0 0.0
    %1008 = vmatpush2.msra.mxu0 0.0
    %1009 = vmatprep.subr.mxu0 0.0
    %1010 = vmatpush2.msra.mxu0 0.0
    %1011 = vmatprep.subr.mxu0 0.0
    %1012 = vmatpush2.msra.mxu0 0.0
    %1013 = vmatprep.subr.mxu0 0.0
    %1014 = vmatpush2.msra.mxu0 0.0
    %1015 = vmatprep.subr.mxu0 0.0
    %1016 = vmatpush2.msra.mxu0 0.0
    %1017 = vmatprep.subr.mxu0 0.0
    %1018 = vmatpush2.msra.mxu0 0.0
    %1019 = vmatprep.subr.mxu0 0.0
    %1020 = vmatpush2.msra.mxu0 0.0
    %1021 = vmatprep.subr.mxu0 0.0
    %1022 = vmatpush2.msra.mxu0 0.0
    %1023 = vmatprep.subr.mxu0 0.0
    %1024 = vmatpush2.msra.mxu0 0.0
    %1025 = vmatprep.subr.mxu0 0.0
    %1026 = vmatpush2.msra.mxu0 0.0
    %1027 = vmatprep.subr.mxu0 0.0
    %1028 = vmatpush2.msra.mxu0 0.0
    %1029 = vmatprep.subr.mxu0 0.0
    %1030 = vmatpush2.msra.mxu0 0.0
    %1031 = vmatprep.subr.mxu0 0.0
    %1032 = vmatpush2.msra.mxu0 0.0
    %1033 = vmatprep.subr.mxu0 0.0
    %1034 = vmatpush2.msra.mxu0 0.0
    %1035 = vmatprep.subr.mxu0 0.0
    %1036 = vmatpush2.msra.mxu0 0.0
    %1037 = vmatprep.subr.mxu0 0.0
    %1038 = vmatpush2.msra.mxu0 0.0
    %1039 = vmatprep.mubr.f32.mxu0 0.0
    %1040 = vmatmul.mubr.f32.gmra.mxu0 %v970
    %v1041 = vpop.f32.mrf.mxu0
    %v1042 = vadd.f32 0.0, %v1041
    %v1043 = vpop.f32.mrf.mxu0
    %1044 = vmatprep.mubr.f32.mxu0 0.0
    %1045 = vmatmul.mubr.f32.gmra.mxu0 %v973
    %v1046 = vpop.f32.mrf.mxu0
    %v1047 = vadd.f32 0.0, %v1046
    %v1048 = vpop.f32.mrf.mxu0
    %1049 = vdwg.mxu0
    %v1052 = vcombine.high %v1042, %v1042
    %v1054 = vunpack.c.l.s4 1966171168
    %v1055 = vunpack.c.0.s8 %v1054
    %v1056 = vlaneseq
    %v1057 = vshrl.u32 %v1056, 7
    %v1058 = vsub.s32 %v1055, %v1057
    %v1059 = vrot.slane %v1042, %v1058
    %v1061 = vunpack.c.l.s4 1966171168
    %v1062 = vunpack.c.0.s8 %v1061
    %v1063 = vlaneseq
    %v1064 = vshrl.u32 %v1063, 7
    %v1065 = vsub.s32 %v1062, %v1064
    %v1066 = vrot.slane %v1052, %v1065
    %v1067 = vcombine.high %v1059, %v1059
    %v1068 = vcombine.high %v1066, %v1066
    %v1070 = vunpack.c.l.s4 1966171168
    %v1071 = vunpack.c.0.s8 %v1070
    %v1072 = vlaneseq
    %v1073 = vshrl.u32 %v1072, 7
    %v1074 = vsub.s32 %v1071, %v1073
    %v1075 = vrot.slane %v1059, %v1074
    %v1077 = vunpack.c.l.s4 1966171168
    %v1078 = vunpack.c.0.s8 %v1077
    %v1079 = vlaneseq
    %v1080 = vshrl.u32 %v1079, 7
    %v1081 = vsub.s32 %v1078, %v1080
    %v1082 = vrot.slane %v1066, %v1081
    %v1084 = vunpack.c.l.s4 1966171168
    %v1085 = vunpack.c.0.s8 %v1084
    %v1086 = vlaneseq
    %v1087 = vshrl.u32 %v1086, 7
    %v1088 = vsub.s32 %v1085, %v1087
    %v1089 = vrot.slane %v1067, %v1088
    %v1091 = vunpack.c.l.s4 1966171168
    %v1092 = vunpack.c.0.s8 %v1091
    %v1093 = vlaneseq
    %v1094 = vshrl.u32 %v1093, 7
    %v1095 = vsub.s32 %v1092, %v1094
    %v1096 = vrot.slane %v1068, %v1095
    %v1097 = vcombine.high %v1075, %v1075
    %v1098 = vcombine.high %v1082, %v1082
    %v1099 = vcombine.high %v1089, %v1089
    %v1100 = vcombine.high %v1096, %v1096
    %v1101 = vcombine.high %v1047, %v1047
    %v1103 = vunpack.c.l.s4 1966171168
    %v1104 = vunpack.c.0.s8 %v1103
    %v1105 = vlaneseq
    %v1106 = vshrl.u32 %v1105, 7
    %v1107 = vsub.s32 %v1104, %v1106
    %v1108 = vrot.slane %v1047, %v1107
    %v1110 = vunpack.c.l.s4 1966171168
    %v1111 = vunpack.c.0.s8 %v1110
    %v1112 = vlaneseq
    %v1113 = vshrl.u32 %v1112, 7
    %v1114 = vsub.s32 %v1111, %v1113
    %v1115 = vrot.slane %v1101, %v1114
    %v1116 = vcombine.high %v1108, %v1108
    %v1117 = vcombine.high %v1115, %v1115
    %v1119 = vunpack.c.l.s4 1966171168
    %v1120 = vunpack.c.0.s8 %v1119
    %v1121 = vlaneseq
    %v1122 = vshrl.u32 %v1121, 7
    %v1123 = vsub.s32 %v1120, %v1122
    %v1124 = vrot.slane %v1108, %v1123
    %v1126 = vunpack.c.l.s4 1966171168
    %v1127 = vunpack.c.0.s8 %v1126
    %v1128 = vlaneseq
    %v1129 = vshrl.u32 %v1128, 7
    %v1130 = vsub.s32 %v1127, %v1129
    %v1131 = vrot.slane %v1115, %v1130
    %v1133 = vunpack.c.l.s4 1966171168
    %v1134 = vunpack.c.0.s8 %v1133
    %v1135 = vlaneseq
    %v1136 = vshrl.u32 %v1135, 7
    %v1137 = vsub.s32 %v1134, %v1136
    %v1138 = vrot.slane %v1116, %v1137
    %v1140 = vunpack.c.l.s4 1966171168
    %v1141 = vunpack.c.0.s8 %v1140
    %v1142 = vlaneseq
    %v1143 = vshrl.u32 %v1142, 7
    %v1144 = vsub.s32 %v1141, %v1143
    %v1145 = vrot.slane %v1117, %v1144
    %v1146 = vcombine.high %v1124, %v1124
    %v1147 = vcombine.high %v1131, %v1131
    %v1148 = vcombine.high %v1138, %v1138
    %v1149 = vcombine.high %v1145, %v1145
    %v1150 = vlaneseq
    %v1151 = vshrl.u32 %v1150, 7
    %v1152 = vsub.s32 0, %v1151
    %v1153 = vrot.slane %v1075, %v1152
    %v1154 = vlaneseq
    %v1155 = vshrl.u32 %v1154, 7
    %v1156 = vsub.s32 0, %v1155
    %v1157 = vrot.slane %v1089, %v1156
    %v1158 = vlaneseq
    %v1159 = vshrl.u32 %v1158, 7
    %v1160 = vsub.s32 0, %v1159
    %v1161 = vrot.slane %v1097, %v1160
    %v1162 = vlaneseq
    %v1163 = vshrl.u32 %v1162, 7
    %v1164 = vsub.s32 0, %v1163
    %v1165 = vrot.slane %v1099, %v1164
    %v1166 = vlaneseq
    %v1167 = vshrl.u32 %v1166, 7
    %v1168 = vsub.s32 0, %v1167
    %v1169 = vrot.slane %v1082, %v1168
    %v1170 = vlaneseq
    %v1171 = vshrl.u32 %v1170, 7
    %v1172 = vsub.s32 0, %v1171
    %v1173 = vrot.slane %v1096, %v1172
    %v1174 = vlaneseq
    %v1175 = vshrl.u32 %v1174, 7
    %v1176 = vsub.s32 0, %v1175
    %v1177 = vrot.slane %v1098, %v1176
    %v1178 = vlaneseq
    %v1179 = vshrl.u32 %v1178, 7
    %v1180 = vsub.s32 0, %v1179
    %v1181 = vrot.slane %v1100, %v1180
    %v1182 = vlaneseq
    %v1183 = vshrl.u32 %v1182, 7
    %v1184 = vsub.s32 0, %v1183
    %v1185 = vrot.slane %v1124, %v1184
    %v1186 = vlaneseq
    %v1187 = vshrl.u32 %v1186, 7
    %v1188 = vsub.s32 0, %v1187
    %v1189 = vrot.slane %v1138, %v1188
    %v1190 = vlaneseq
    %v1191 = vshrl.u32 %v1190, 7
    %v1192 = vsub.s32 0, %v1191
    %v1193 = vrot.slane %v1146, %v1192
    %v1194 = vlaneseq
    %v1195 = vshrl.u32 %v1194, 7
    %v1196 = vsub.s32 0, %v1195
    %v1197 = vrot.slane %v1148, %v1196
    %v1198 = vlaneseq
    %v1199 = vshrl.u32 %v1198, 7
    %v1200 = vsub.s32 0, %v1199
    %v1201 = vrot.slane %v1131, %v1200
    %v1202 = vlaneseq
    %v1203 = vshrl.u32 %v1202, 7
    %v1204 = vsub.s32 0, %v1203
    %v1205 = vrot.slane %v1145, %v1204
    %v1206 = vlaneseq
    %v1207 = vshrl.u32 %v1206, 7
    %v1208 = vsub.s32 0, %v1207
    %v1209 = vrot.slane %v1147, %v1208
    %v1210 = vlaneseq
    %v1211 = vshrl.u32 %v1210, 7
    %v1212 = vsub.s32 0, %v1211
    %v1213 = vrot.slane %v1149, %v1212
    %1230 = vrot.lane.b32.xlu0 %v1042, 112
    %v1231 = vpop.permute.xlu0 %1230
    %1232 = vrot.lane.b32.xlu0 %v1047, 112
    %v1233 = vpop.permute.xlu0 %1232
    %v1236 = vadd.f32 %v1153, %v1231
    %v1237 = vadd.f32 %v1157, %v1231
    %v1238 = vadd.f32 %v1161, %v1231
    %v1239 = vadd.f32 %v1165, %v1231
    %v1240 = vadd.f32 %v1169, %v1231
    %v1241 = vadd.f32 %v1173, %v1231
    %v1242 = vadd.f32 %v1177, %v1231
    %v1243 = vadd.f32 %v1181, %v1231
    %v1244 = vadd.f32 %v1185, %v1233
    %v1245 = vadd.f32 %v1189, %v1233
    %v1246 = vadd.f32 %v1193, %v1233
    %v1247 = vadd.f32 %v1197, %v1233
    %v1248 = vadd.f32 %v1201, %v1233
    %v1249 = vadd.f32 %v1205, %v1233
    %v1250 = vadd.f32 %v1209, %v1233
    %v1251 = vadd.f32 %v1213, %v1233
    %v1252 = vadd.f32 %v1236, %v312
    %v1253 = vadd.f32 %v1237, %v317
    %v1254 = vadd.f32 %v1238, %v322
    %v1255 = vadd.f32 %v1239, %v327
    %v1256 = vadd.f32 %v1240, %v332
    %v1257 = vadd.f32 %v1241, %v337
    %v1258 = vadd.f32 %v1242, %v342
    %v1259 = vadd.f32 %v1243, %v347
    %v1260 = vadd.f32 %v1244, %v352
    %v1261 = vadd.f32 %v1245, %v357
    %v1262 = vadd.f32 %v1246, %v362
    %v1263 = vadd.f32 %v1247, %v367
    %v1264 = vadd.f32 %v1248, %v372
    %v1265 = vadd.f32 %v1249, %v377
    %v1266 = vadd.f32 %v1250, %v382
    %v1267 = vadd.f32 %v1251, %v387
    %v1268 = vmax.f32 %v1252, 0.0
    %v1269 = vmax.f32 %v1253, 0.0
    %v1270 = vmax.f32 %v1254, 0.0
    %v1271 = vmax.f32 %v1255, 0.0
    %v1272 = vmax.f32 %v1256, 0.0
    %v1273 = vmax.f32 %v1257, 0.0
    %v1274 = vmax.f32 %v1258, 0.0
    %v1275 = vmax.f32 %v1259, 0.0
    %v1276 = vmax.f32 %v1260, 0.0
    %v1277 = vmax.f32 %v1261, 0.0
    %v1278 = vmax.f32 %v1262, 0.0
    %v1279 = vmax.f32 %v1263, 0.0
    %v1280 = vmax.f32 %v1264, 0.0
    %v1281 = vmax.f32 %v1265, 0.0
    %v1282 = vmax.f32 %v1266, 0.0
    %v1283 = vmax.f32 %v1267, 0.0
    %v1284 = vmul.f32 %v69, %v1268
    %v1285 = vmul.f32 %v76, %v1269
    %v1286 = vmul.f32 %v83, %v1270
    %v1287 = vmul.f32 %v90, %v1271
    %v1288 = vmul.f32 %v97, %v1272
    %v1289 = vmul.f32 %v104, %v1273
    %v1290 = vmul.f32 %v111, %v1274
    %v1291 = vmul.f32 %v118, %v1275
    %v1292 = vmul.f32 %v125, %v1276
    %v1293 = vmul.f32 %v132, %v1277
    %v1294 = vmul.f32 %v139, %v1278
    %v1295 = vmul.f32 %v146, %v1279
    %v1296 = vmul.f32 %v153, %v1280
    %v1297 = vmul.f32 %v160, %v1281
    %v1298 = vmul.f32 %v167, %v1282
    %v1299 = vmul.f32 %v174, %v1283
    %v1300 = vsel %vm721, %v1284, 0.0
    %v1301 = vrot.slane %v1300, 4
    %v1302 = vadd.f32 %v1300, %v1301
    %v1303 = vrot.slane %v1302, 2
    %v1304 = vadd.f32 %v1302, %v1303
    %v1305 = vrot.slane %v1304, 1
    %v1306 = vadd.f32 %v1304, %v1305
    %v1307 = vsel %vm721, %v1285, 0.0
    %v1308 = vrot.slane %v1307, 4
    %v1309 = vadd.f32 %v1307, %v1308
    %v1310 = vrot.slane %v1309, 2
    %v1311 = vadd.f32 %v1309, %v1310
    %v1312 = vrot.slane %v1311, 1
    %v1313 = vadd.f32 %v1311, %v1312
    %v1314 = vsel %vm721, %v1286, 0.0
    %v1315 = vrot.slane %v1314, 4
    %v1316 = vadd.f32 %v1314, %v1315
    %v1317 = vrot.slane %v1316, 2
    %v1318 = vadd.f32 %v1316, %v1317
    %v1319 = vrot.slane %v1318, 1
    %v1320 = vadd.f32 %v1318, %v1319
    %v1321 = vsel %vm721, %v1287, 0.0
    %v1322 = vrot.slane %v1321, 4
    %v1323 = vadd.f32 %v1321, %v1322
    %v1324 = vrot.slane %v1323, 2
    %v1325 = vadd.f32 %v1323, %v1324
    %v1326 = vrot.slane %v1325, 1
    %v1327 = vadd.f32 %v1325, %v1326
    %v1328 = vsel %vm721, %v1288, 0.0
    %v1329 = vrot.slane %v1328, 4
    %v1330 = vadd.f32 %v1328, %v1329
    %v1331 = vrot.slane %v1330, 2
    %v1332 = vadd.f32 %v1330, %v1331
    %v1333 = vrot.slane %v1332, 1
    %v1334 = vadd.f32 %v1332, %v1333
    %v1335 = vsel %vm721, %v1289, 0.0
    %v1336 = vrot.slane %v1335, 4
    %v1337 = vadd.f32 %v1335, %v1336
    %v1338 = vrot.slane %v1337, 2
    %v1339 = vadd.f32 %v1337, %v1338
    %v1340 = vrot.slane %v1339, 1
    %v1341 = vadd.f32 %v1339, %v1340
    %v1342 = vsel %vm721, %v1290, 0.0
    %v1343 = vrot.slane %v1342, 4
    %v1344 = vadd.f32 %v1342, %v1343
    %v1345 = vrot.slane %v1344, 2
    %v1346 = vadd.f32 %v1344, %v1345
    %v1347 = vrot.slane %v1346, 1
    %v1348 = vadd.f32 %v1346, %v1347
    %v1349 = vsel %vm721, %v1291, 0.0
    %v1350 = vrot.slane %v1349, 4
    %v1351 = vadd.f32 %v1349, %v1350
    %v1352 = vrot.slane %v1351, 2
    %v1353 = vadd.f32 %v1351, %v1352
    %v1354 = vrot.slane %v1353, 1
    %v1355 = vadd.f32 %v1353, %v1354
    %v1356 = vsel %vm721, %v1292, 0.0
    %v1357 = vrot.slane %v1356, 4
    %v1358 = vadd.f32 %v1356, %v1357
    %v1359 = vrot.slane %v1358, 2
    %v1360 = vadd.f32 %v1358, %v1359
    %v1361 = vrot.slane %v1360, 1
    %v1362 = vadd.f32 %v1360, %v1361
    %v1363 = vsel %vm721, %v1293, 0.0
    %v1364 = vrot.slane %v1363, 4
    %v1365 = vadd.f32 %v1363, %v1364
    %v1366 = vrot.slane %v1365, 2
    %v1367 = vadd.f32 %v1365, %v1366
    %v1368 = vrot.slane %v1367, 1
    %v1369 = vadd.f32 %v1367, %v1368
    %v1370 = vsel %vm721, %v1294, 0.0
    %v1371 = vrot.slane %v1370, 4
    %v1372 = vadd.f32 %v1370, %v1371
    %v1373 = vrot.slane %v1372, 2
    %v1374 = vadd.f32 %v1372, %v1373
    %v1375 = vrot.slane %v1374, 1
    %v1376 = vadd.f32 %v1374, %v1375
    %v1377 = vsel %vm721, %v1295, 0.0
    %v1378 = vrot.slane %v1377, 4
    %v1379 = vadd.f32 %v1377, %v1378
    %v1380 = vrot.slane %v1379, 2
    %v1381 = vadd.f32 %v1379, %v1380
    %v1382 = vrot.slane %v1381, 1
    %v1383 = vadd.f32 %v1381, %v1382
    %v1384 = vsel %vm721, %v1296, 0.0
    %v1385 = vrot.slane %v1384, 4
    %v1386 = vadd.f32 %v1384, %v1385
    %v1387 = vrot.slane %v1386, 2
    %v1388 = vadd.f32 %v1386, %v1387
    %v1389 = vrot.slane %v1388, 1
    %v1390 = vadd.f32 %v1388, %v1389
    %v1391 = vsel %vm721, %v1297, 0.0
    %v1392 = vrot.slane %v1391, 4
    %v1393 = vadd.f32 %v1391, %v1392
    %v1394 = vrot.slane %v1393, 2
    %v1395 = vadd.f32 %v1393, %v1394
    %v1396 = vrot.slane %v1395, 1
    %v1397 = vadd.f32 %v1395, %v1396
    %v1398 = vsel %vm721, %v1298, 0.0
    %v1399 = vrot.slane %v1398, 4
    %v1400 = vadd.f32 %v1398, %v1399
    %v1401 = vrot.slane %v1400, 2
    %v1402 = vadd.f32 %v1400, %v1401
    %v1403 = vrot.slane %v1402, 1
    %v1404 = vadd.f32 %v1402, %v1403
    %v1405 = vsel %vm721, %v1299, 0.0
    %v1406 = vrot.slane %v1405, 4
    %v1407 = vadd.f32 %v1405, %v1406
    %v1408 = vrot.slane %v1407, 2
    %v1409 = vadd.f32 %v1407, %v1408
    %v1410 = vrot.slane %v1409, 1
    %v1411 = vadd.f32 %v1409, %v1410
    %v1428 = vsel %vm850, %v1313, %v1306
    %v1429 = vsel %vm852, %v1320, %v1428
    %v1430 = vsel %vm854, %v1327, %v1429
    %v1431 = vsel %vm856, %v1334, %v1430
    %v1432 = vsel %vm858, %v1341, %v1431
    %v1433 = vsel %vm860, %v1348, %v1432
    %v1434 = vsel %vm862, %v1355, %v1433
    %v1435 = vsel %vm850, %v1369, %v1362
    %v1436 = vsel %vm852, %v1376, %v1435
    %v1437 = vsel %vm854, %v1383, %v1436
    %v1438 = vsel %vm856, %v1390, %v1437
    %v1439 = vsel %vm858, %v1397, %v1438
    %v1440 = vsel %vm860, %v1404, %v1439
    %v1441 = vsel %vm862, %v1411, %v1440
    %1442 = vrot.lane.b32.xlu0 %v1434, 8
    %v1443 = vpop.permute.xlu0 %1442
    %1444 = vrot.lane.b32.xlu0 %v1441, 8
    %v1445 = vpop.permute.xlu0 %1444
    %v1448 = vsel %vm175, %v967, %v1443
    %v1449 = vsel %vm175, %v968, %v1445
    %v1451 = vsel %vm883, %v1448, 0
    %v1454 = vsel %vm883, %v1449, 0
    %1456 = vmatprep.subr.mxu0 0.0
    %1457 = vmatpush1.msra.mxu0 0.0
    %1458 = vmatprep.subr.mxu0 0.0
    %1459 = vmatpush1.msra.mxu0 0.0
    %1460 = vmatprep.subr.mxu0 0.0
    %1461 = vmatpush1.msra.mxu0 0.0
    %1462 = vmatprep.subr.mxu0 0.0
    %1463 = vmatpush1.msra.mxu0 0.0
    %1464 = vmatprep.subr.mxu0 0.0
    %1465 = vmatpush1.msra.mxu0 0.0
    %1466 = vmatprep.subr.mxu0 0.0
    %1467 = vmatpush1.msra.mxu0 0.0
    %1468 = vmatprep.subr.mxu0 0.0
    %1469 = vmatpush1.msra.mxu0 0.0
    %1470 = vmatprep.subr.mxu0 0.0
    %1471 = vmatpush1.msra.mxu0 0.0
    %1472 = vmatprep.subr.mxu0 0.0
    %1473 = vmatpush1.msra.mxu0 0.0
    %1474 = vmatprep.subr.mxu0 0.0
    %1475 = vmatpush1.msra.mxu0 0.0
    %1476 = vmatprep.subr.mxu0 0.0
    %1477 = vmatpush1.msra.mxu0 0.0
    %1478 = vmatprep.subr.mxu0 0.0
    %1479 = vmatpush1.msra.mxu0 0.0
    %1480 = vmatprep.subr.mxu0 0.0
    %1481 = vmatpush1.msra.mxu0 0.0
    %1482 = vmatprep.subr.mxu0 0.0
    %1483 = vmatpush1.msra.mxu0 %v52
    %1484 = vmatprep.subr.mxu0 0.0
    %1485 = vmatpush1.msra.mxu0 %v51
    %1486 = vmatprep.subr.mxu0 0.0
    %1487 = vmatpush1.msra.mxu0 %v50
    %1488 = vmatprep.subr.mxu0 0.0
    %1489 = vmatpush2.msra.mxu0 0.0
    %1490 = vmatprep.subr.mxu0 0.0
    %1491 = vmatpush2.msra.mxu0 0.0
    %1492 = vmatprep.subr.mxu0 0.0
    %1493 = vmatpush2.msra.mxu0 0.0
    %1494 = vmatprep.subr.mxu0 0.0
    %1495 = vmatpush2.msra.mxu0 0.0
    %1496 = vmatprep.subr.mxu0 0.0
    %1497 = vmatpush2.msra.mxu0 0.0
    %1498 = vmatprep.subr.mxu0 0.0
    %1499 = vmatpush2.msra.mxu0 0.0
    %1500 = vmatprep.subr.mxu0 0.0
    %1501 = vmatpush2.msra.mxu0 0.0
    %1502 = vmatprep.subr.mxu0 0.0
    %1503 = vmatpush2.msra.mxu0 0.0
    %1504 = vmatprep.subr.mxu0 0.0
    %1505 = vmatpush2.msra.mxu0 0.0
    %1506 = vmatprep.subr.mxu0 0.0
    %1507 = vmatpush2.msra.mxu0 0.0
    %1508 = vmatprep.subr.mxu0 0.0
    %1509 = vmatpush2.msra.mxu0 0.0
    %1510 = vmatprep.subr.mxu0 0.0
    %1511 = vmatpush2.msra.mxu0 0.0
    %1512 = vmatprep.subr.mxu0 0.0
    %1513 = vmatpush2.msra.mxu0 0.0
    %1514 = vmatprep.subr.mxu0 0.0
    %1515 = vmatpush2.msra.mxu0 0.0
    %1516 = vmatprep.subr.mxu0 0.0
    %1517 = vmatpush2.msra.mxu0 0.0
    %1518 = vmatprep.subr.mxu0 0.0
    %1519 = vmatpush2.msra.mxu0 0.0
    %1520 = vmatprep.mubr.f32.mxu0 0.0
    %1521 = vmatmul.mubr.f32.gmra.mxu0 %v1451
    %v1522 = vpop.f32.mrf.mxu0
    %v1523 = vadd.f32 %v882, %v1522
    %v1524 = vpop.f32.mrf.mxu0
    %1525 = vmatprep.mubr.f32.mxu0 0.0
    %1526 = vmatmul.mubr.f32.gmra.mxu0 %v1454
    %v1527 = vpop.f32.mrf.mxu0
    %v1528 = vadd.f32 %v882, %v1527
    %v1529 = vpop.f32.mrf.mxu0
    %1530 = vdwg.mxu0
    %v1531 = vtanh.pop %v1523
    %v1532 = vtanh.pop %v1528
    %v1533 = vsel %vm186, %v1531, %v29
    %v1534 = vsel %vm187, %v1532, %v30
    %v1536 = vsel %vm175, %v1533, 0
    %v1539 = vsel %vm175, %v1534, 0
    %1541 = vmatprep.subr.mxu0 0.0
    %1542 = vmatpush1.msra.mxu0 0.0
    %1543 = vmatprep.subr.mxu0 0.0
    %1544 = vmatpush1.msra.mxu0 0.0
    %1545 = vmatprep.subr.mxu0 0.0
    %1546 = vmatpush1.msra.mxu0 0.0
    %1547 = vmatprep.subr.mxu0 0.0
    %1548 = vmatpush1.msra.mxu0 0.0
    %1549 = vmatprep.subr.mxu0 0.0
    %1550 = vmatpush1.msra.mxu0 0.0
    %1551 = vmatprep.subr.mxu0 0.0
    %1552 = vmatpush1.msra.mxu0 0.0
    %1553 = vmatprep.subr.mxu0 0.0
    %1554 = vmatpush1.msra.mxu0 0.0
    %1555 = vmatprep.subr.mxu0 0.0
    %1556 = vmatpush1.msra.mxu0 0.0
    %1557 = vmatprep.subr.mxu0 0.0
    %1558 = vmatpush1.msra.mxu0 0.0
    %1559 = vmatprep.subr.mxu0 0.0
    %1560 = vmatpush1.msra.mxu0 0.0
    %1561 = vmatprep.subr.mxu0 0.0
    %1562 = vmatpush1.msra.mxu0 0.0
    %1563 = vmatprep.subr.mxu0 0.0
    %1564 = vmatpush1.msra.mxu0 0.0
    %1565 = vmatprep.subr.mxu0 0.0
    %1566 = vmatpush1.msra.mxu0 0.0
    %1567 = vmatprep.subr.mxu0 0.0
    %1568 = vmatpush1.msra.mxu0 0.0
    %1569 = vmatprep.subr.mxu0 0.0
    %1570 = vmatpush1.msra.mxu0 0.0
    %1571 = vmatprep.subr.mxu0 0.0
    %1572 = vmatpush1.msra.mxu0 %v47
    %1573 = vmatprep.subr.mxu0 0.0
    %1574 = vmatpush2.msra.mxu0 0.0
    %1575 = vmatprep.subr.mxu0 0.0
    %1576 = vmatpush2.msra.mxu0 0.0
    %1577 = vmatprep.subr.mxu0 0.0
    %1578 = vmatpush2.msra.mxu0 0.0
    %1579 = vmatprep.subr.mxu0 0.0
    %1580 = vmatpush2.msra.mxu0 0.0
    %1581 = vmatprep.subr.mxu0 0.0
    %1582 = vmatpush2.msra.mxu0 0.0
    %1583 = vmatprep.subr.mxu0 0.0
    %1584 = vmatpush2.msra.mxu0 0.0
    %1585 = vmatprep.subr.mxu0 0.0
    %1586 = vmatpush2.msra.mxu0 0.0
    %1587 = vmatprep.subr.mxu0 0.0
    %1588 = vmatpush2.msra.mxu0 0.0
    %1589 = vmatprep.subr.mxu0 0.0
    %1590 = vmatpush2.msra.mxu0 0.0
    %1591 = vmatprep.subr.mxu0 0.0
    %1592 = vmatpush2.msra.mxu0 0.0
    %1593 = vmatprep.subr.mxu0 0.0
    %1594 = vmatpush2.msra.mxu0 0.0
    %1595 = vmatprep.subr.mxu0 0.0
    %1596 = vmatpush2.msra.mxu0 0.0
    %1597 = vmatprep.subr.mxu0 0.0
    %1598 = vmatpush2.msra.mxu0 0.0
    %1599 = vmatprep.subr.mxu0 0.0
    %1600 = vmatpush2.msra.mxu0 0.0
    %1601 = vmatprep.subr.mxu0 0.0
    %1602 = vmatpush2.msra.mxu0 0.0
    %1603 = vmatprep.subr.mxu0 0.0
    %1604 = vmatpush2.msra.mxu0 0.0
    %1605 = vmatprep.mubr.f32.mxu0 0.0
    %1606 = vmatmul.mubr.f32.gmra.mxu0 %v1536
    %v1607 = vpop.f32.mrf.mxu0
    %v1608 = vadd.f32 0.0, %v1607
    %v1609 = vpop.f32.mrf.mxu0
    %1610 = vmatprep.mubr.f32.mxu0 0.0
    %1611 = vmatmul.mubr.f32.gmra.mxu0 %v1539
    %v1612 = vpop.f32.mrf.mxu0
    %v1613 = vadd.f32 0.0, %v1612
    %v1614 = vpop.f32.mrf.mxu0
    %1615 = vdwg.mxu0
    %v1618 = vcombine.high %v1608, %v1608
    %v1620 = vunpack.c.l.s4 1966171168
    %v1621 = vunpack.c.0.s8 %v1620
    %v1622 = vlaneseq
    %v1623 = vshrl.u32 %v1622, 7
    %v1624 = vsub.s32 %v1621, %v1623
    %v1625 = vrot.slane %v1608, %v1624
    %v1627 = vunpack.c.l.s4 1966171168
    %v1628 = vunpack.c.0.s8 %v1627
    %v1629 = vlaneseq
    %v1630 = vshrl.u32 %v1629, 7
    %v1631 = vsub.s32 %v1628, %v1630
    %v1632 = vrot.slane %v1618, %v1631
    %v1633 = vcombine.high %v1625, %v1625
    %v1634 = vcombine.high %v1632, %v1632
    %v1636 = vunpack.c.l.s4 1966171168
    %v1637 = vunpack.c.0.s8 %v1636
    %v1638 = vlaneseq
    %v1639 = vshrl.u32 %v1638, 7
    %v1640 = vsub.s32 %v1637, %v1639
    %v1641 = vrot.slane %v1625, %v1640
    %v1643 = vunpack.c.l.s4 1966171168
    %v1644 = vunpack.c.0.s8 %v1643
    %v1645 = vlaneseq
    %v1646 = vshrl.u32 %v1645, 7
    %v1647 = vsub.s32 %v1644, %v1646
    %v1648 = vrot.slane %v1632, %v1647
    %v1650 = vunpack.c.l.s4 1966171168
    %v1651 = vunpack.c.0.s8 %v1650
    %v1652 = vlaneseq
    %v1653 = vshrl.u32 %v1652, 7
    %v1654 = vsub.s32 %v1651, %v1653
    %v1655 = vrot.slane %v1633, %v1654
    %v1657 = vunpack.c.l.s4 1966171168
    %v1658 = vunpack.c.0.s8 %v1657
    %v1659 = vlaneseq
    %v1660 = vshrl.u32 %v1659, 7
    %v1661 = vsub.s32 %v1658, %v1660
    %v1662 = vrot.slane %v1634, %v1661
    %v1663 = vcombine.high %v1641, %v1641
    %v1664 = vcombine.high %v1648, %v1648
    %v1665 = vcombine.high %v1655, %v1655
    %v1666 = vcombine.high %v1662, %v1662
    %v1667 = vcombine.high %v1613, %v1613
    %v1669 = vunpack.c.l.s4 1966171168
    %v1670 = vunpack.c.0.s8 %v1669
    %v1671 = vlaneseq
    %v1672 = vshrl.u32 %v1671, 7
    %v1673 = vsub.s32 %v1670, %v1672
    %v1674 = vrot.slane %v1613, %v1673
    %v1676 = vunpack.c.l.s4 1966171168
    %v1677 = vunpack.c.0.s8 %v1676
    %v1678 = vlaneseq
    %v1679 = vshrl.u32 %v1678, 7
    %v1680 = vsub.s32 %v1677, %v1679
    %v1681 = vrot.slane %v1667, %v1680
    %v1682 = vcombine.high %v1674, %v1674
    %v1683 = vcombine.high %v1681, %v1681
    %v1685 = vunpack.c.l.s4 1966171168
    %v1686 = vunpack.c.0.s8 %v1685
    %v1687 = vlaneseq
    %v1688 = vshrl.u32 %v1687, 7
    %v1689 = vsub.s32 %v1686, %v1688
    %v1690 = vrot.slane %v1674, %v1689
    %v1692 = vunpack.c.l.s4 1966171168
    %v1693 = vunpack.c.0.s8 %v1692
    %v1694 = vlaneseq
    %v1695 = vshrl.u32 %v1694, 7
    %v1696 = vsub.s32 %v1693, %v1695
    %v1697 = vrot.slane %v1681, %v1696
    %v1699 = vunpack.c.l.s4 1966171168
    %v1700 = vunpack.c.0.s8 %v1699
    %v1701 = vlaneseq
    %v1702 = vshrl.u32 %v1701, 7
    %v1703 = vsub.s32 %v1700, %v1702
    %v1704 = vrot.slane %v1682, %v1703
    %v1706 = vunpack.c.l.s4 1966171168
    %v1707 = vunpack.c.0.s8 %v1706
    %v1708 = vlaneseq
    %v1709 = vshrl.u32 %v1708, 7
    %v1710 = vsub.s32 %v1707, %v1709
    %v1711 = vrot.slane %v1683, %v1710
    %v1712 = vcombine.high %v1690, %v1690
    %v1713 = vcombine.high %v1697, %v1697
    %v1714 = vcombine.high %v1704, %v1704
    %v1715 = vcombine.high %v1711, %v1711
    %v1716 = vlaneseq
    %v1717 = vshrl.u32 %v1716, 7
    %v1718 = vsub.s32 0, %v1717
    %v1719 = vrot.slane %v1641, %v1718
    %v1720 = vlaneseq
    %v1721 = vshrl.u32 %v1720, 7
    %v1722 = vsub.s32 0, %v1721
    %v1723 = vrot.slane %v1655, %v1722
    %v1724 = vlaneseq
    %v1725 = vshrl.u32 %v1724, 7
    %v1726 = vsub.s32 0, %v1725
    %v1727 = vrot.slane %v1663, %v1726
    %v1728 = vlaneseq
    %v1729 = vshrl.u32 %v1728, 7
    %v1730 = vsub.s32 0, %v1729
    %v1731 = vrot.slane %v1665, %v1730
    %v1732 = vlaneseq
    %v1733 = vshrl.u32 %v1732, 7
    %v1734 = vsub.s32 0, %v1733
    %v1735 = vrot.slane %v1648, %v1734
    %v1736 = vlaneseq
    %v1737 = vshrl.u32 %v1736, 7
    %v1738 = vsub.s32 0, %v1737
    %v1739 = vrot.slane %v1662, %v1738
    %v1740 = vlaneseq
    %v1741 = vshrl.u32 %v1740, 7
    %v1742 = vsub.s32 0, %v1741
    %v1743 = vrot.slane %v1664, %v1742
    %v1744 = vlaneseq
    %v1745 = vshrl.u32 %v1744, 7
    %v1746 = vsub.s32 0, %v1745
    %v1747 = vrot.slane %v1666, %v1746
    %v1748 = vlaneseq
    %v1749 = vshrl.u32 %v1748, 7
    %v1750 = vsub.s32 0, %v1749
    %v1751 = vrot.slane %v1690, %v1750
    %v1752 = vlaneseq
    %v1753 = vshrl.u32 %v1752, 7
    %v1754 = vsub.s32 0, %v1753
    %v1755 = vrot.slane %v1704, %v1754
    %v1756 = vlaneseq
    %v1757 = vshrl.u32 %v1756, 7
    %v1758 = vsub.s32 0, %v1757
    %v1759 = vrot.slane %v1712, %v1758
    %v1760 = vlaneseq
    %v1761 = vshrl.u32 %v1760, 7
    %v1762 = vsub.s32 0, %v1761
    %v1763 = vrot.slane %v1714, %v1762
    %v1764 = vlaneseq
    %v1765 = vshrl.u32 %v1764, 7
    %v1766 = vsub.s32 0, %v1765
    %v1767 = vrot.slane %v1697, %v1766
    %v1768 = vlaneseq
    %v1769 = vshrl.u32 %v1768, 7
    %v1770 = vsub.s32 0, %v1769
    %v1771 = vrot.slane %v1711, %v1770
    %v1772 = vlaneseq
    %v1773 = vshrl.u32 %v1772, 7
    %v1774 = vsub.s32 0, %v1773
    %v1775 = vrot.slane %v1713, %v1774
    %v1776 = vlaneseq
    %v1777 = vshrl.u32 %v1776, 7
    %v1778 = vsub.s32 0, %v1777
    %v1779 = vrot.slane %v1715, %v1778
    %1796 = vrot.lane.b32.xlu0 %v1608, 112
    %v1797 = vpop.permute.xlu0 %1796
    %1798 = vrot.lane.b32.xlu0 %v1613, 112
    %v1799 = vpop.permute.xlu0 %1798
    %v1802 = vadd.f32 %v1719, %v1797
    %v1803 = vadd.f32 %v1723, %v1797
    %v1804 = vadd.f32 %v1727, %v1797
    %v1805 = vadd.f32 %v1731, %v1797
    %v1806 = vadd.f32 %v1735, %v1797
    %v1807 = vadd.f32 %v1739, %v1797
    %v1808 = vadd.f32 %v1743, %v1797
    %v1809 = vadd.f32 %v1747, %v1797
    %v1810 = vadd.f32 %v1751, %v1799
    %v1811 = vadd.f32 %v1755, %v1799
    %v1812 = vadd.f32 %v1759, %v1799
    %v1813 = vadd.f32 %v1763, %v1799
    %v1814 = vadd.f32 %v1767, %v1799
    %v1815 = vadd.f32 %v1771, %v1799
    %v1816 = vadd.f32 %v1775, %v1799
    %v1817 = vadd.f32 %v1779, %v1799
    %v1818 = vadd.f32 %v1802, %v312
    %v1819 = vadd.f32 %v1803, %v317
    %v1820 = vadd.f32 %v1804, %v322
    %v1821 = vadd.f32 %v1805, %v327
    %v1822 = vadd.f32 %v1806, %v332
    %v1823 = vadd.f32 %v1807, %v337
    %v1824 = vadd.f32 %v1808, %v342
    %v1825 = vadd.f32 %v1809, %v347
    %v1826 = vadd.f32 %v1810, %v352
    %v1827 = vadd.f32 %v1811, %v357
    %v1828 = vadd.f32 %v1812, %v362
    %v1829 = vadd.f32 %v1813, %v367
    %v1830 = vadd.f32 %v1814, %v372
    %v1831 = vadd.f32 %v1815, %v377
    %v1832 = vadd.f32 %v1816, %v382
    %v1833 = vadd.f32 %v1817, %v387
    %v1834 = vmax.f32 %v1818, 0.0
    %v1835 = vmax.f32 %v1819, 0.0
    %v1836 = vmax.f32 %v1820, 0.0
    %v1837 = vmax.f32 %v1821, 0.0
    %v1838 = vmax.f32 %v1822, 0.0
    %v1839 = vmax.f32 %v1823, 0.0
    %v1840 = vmax.f32 %v1824, 0.0
    %v1841 = vmax.f32 %v1825, 0.0
    %v1842 = vmax.f32 %v1826, 0.0
    %v1843 = vmax.f32 %v1827, 0.0
    %v1844 = vmax.f32 %v1828, 0.0
    %v1845 = vmax.f32 %v1829, 0.0
    %v1846 = vmax.f32 %v1830, 0.0
    %v1847 = vmax.f32 %v1831, 0.0
    %v1848 = vmax.f32 %v1832, 0.0
    %v1849 = vmax.f32 %v1833, 0.0
    %v1850 = vmul.f32 %v69, %v1834
    %v1851 = vmul.f32 %v76, %v1835
    %v1852 = vmul.f32 %v83, %v1836
    %v1853 = vmul.f32 %v90, %v1837
    %v1854 = vmul.f32 %v97, %v1838
    %v1855 = vmul.f32 %v104, %v1839
    %v1856 = vmul.f32 %v111, %v1840
    %v1857 = vmul.f32 %v118, %v1841
    %v1858 = vmul.f32 %v125, %v1842
    %v1859 = vmul.f32 %v132, %v1843
    %v1860 = vmul.f32 %v139, %v1844
    %v1861 = vmul.f32 %v146, %v1845
    %v1862 = vmul.f32 %v153, %v1846
    %v1863 = vmul.f32 %v160, %v1847
    %v1864 = vmul.f32 %v167, %v1848
    %v1865 = vmul.f32 %v174, %v1849
    %v1866 = vsel %vm721, %v1850, 0.0
    %v1867 = vrot.slane %v1866, 4
    %v1868 = vadd.f32 %v1866, %v1867
    %v1869 = vrot.slane %v1868, 2
    %v1870 = vadd.f32 %v1868, %v1869
    %v1871 = vrot.slane %v1870, 1
    %v1872 = vadd.f32 %v1870, %v1871
    %v1873 = vsel %vm721, %v1851, 0.0
    %v1874 = vrot.slane %v1873, 4
    %v1875 = vadd.f32 %v1873, %v1874
    %v1876 = vrot.slane %v1875, 2
    %v1877 = vadd.f32 %v1875, %v1876
    %v1878 = vrot.slane %v1877, 1
    %v1879 = vadd.f32 %v1877, %v1878
    %v1880 = vsel %vm721, %v1852, 0.0
    %v1881 = vrot.slane %v1880, 4
    %v1882 = vadd.f32 %v1880, %v1881
    %v1883 = vrot.slane %v1882, 2
    %v1884 = vadd.f32 %v1882, %v1883
    %v1885 = vrot.slane %v1884, 1
    %v1886 = vadd.f32 %v1884, %v1885
    %v1887 = vsel %vm721, %v1853, 0.0
    %v1888 = vrot.slane %v1887, 4
    %v1889 = vadd.f32 %v1887, %v1888
    %v1890 = vrot.slane %v1889, 2
    %v1891 = vadd.f32 %v1889, %v1890
    %v1892 = vrot.slane %v1891, 1
    %v1893 = vadd.f32 %v1891, %v1892
    %v1894 = vsel %vm721, %v1854, 0.0
    %v1895 = vrot.slane %v1894, 4
    %v1896 = vadd.f32 %v1894, %v1895
    %v1897 = vrot.slane %v1896, 2
    %v1898 = vadd.f32 %v1896, %v1897
    %v1899 = vrot.slane %v1898, 1
    %v1900 = vadd.f32 %v1898, %v1899
    %v1901 = vsel %vm721, %v1855, 0.0
    %v1902 = vrot.slane %v1901, 4
    %v1903 = vadd.f32 %v1901, %v1902
    %v1904 = vrot.slane %v1903, 2
    %v1905 = vadd.f32 %v1903, %v1904
    %v1906 = vrot.slane %v1905, 1
    %v1907 = vadd.f32 %v1905, %v1906
    %v1908 = vsel %vm721, %v1856, 0.0
    %v1909 = vrot.slane %v1908, 4
    %v1910 = vadd.f32 %v1908, %v1909
    %v1911 = vrot.slane %v1910, 2
    %v1912 = vadd.f32 %v1910, %v1911
    %v1913 = vrot.slane %v1912, 1
    %v1914 = vadd.f32 %v1912, %v1913
    %v1915 = vsel %vm721, %v1857, 0.0
    %v1916 = vrot.slane %v1915, 4
    %v1917 = vadd.f32 %v1915, %v1916
    %v1918 = vrot.slane %v1917, 2
    %v1919 = vadd.f32 %v1917, %v1918
    %v1920 = vrot.slane %v1919, 1
    %v1921 = vadd.f32 %v1919, %v1920
    %v1922 = vsel %vm721, %v1858, 0.0
    %v1923 = vrot.slane %v1922, 4
    %v1924 = vadd.f32 %v1922, %v1923
    %v1925 = vrot.slane %v1924, 2
    %v1926 = vadd.f32 %v1924, %v1925
    %v1927 = vrot.slane %v1926, 1
    %v1928 = vadd.f32 %v1926, %v1927
    %v1929 = vsel %vm721, %v1859, 0.0
    %v1930 = vrot.slane %v1929, 4
    %v1931 = vadd.f32 %v1929, %v1930
    %v1932 = vrot.slane %v1931, 2
    %v1933 = vadd.f32 %v1931, %v1932
    %v1934 = vrot.slane %v1933, 1
    %v1935 = vadd.f32 %v1933, %v1934
    %v1936 = vsel %vm721, %v1860, 0.0
    %v1937 = vrot.slane %v1936, 4
    %v1938 = vadd.f32 %v1936, %v1937
    %v1939 = vrot.slane %v1938, 2
    %v1940 = vadd.f32 %v1938, %v1939
    %v1941 = vrot.slane %v1940, 1
    %v1942 = vadd.f32 %v1940, %v1941
    %v1943 = vsel %vm721, %v1861, 0.0
    %v1944 = vrot.slane %v1943, 4
    %v1945 = vadd.f32 %v1943, %v1944
    %v1946 = vrot.slane %v1945, 2
    %v1947 = vadd.f32 %v1945, %v1946
    %v1948 = vrot.slane %v1947, 1
    %v1949 = vadd.f32 %v1947, %v1948
    %v1950 = vsel %vm721, %v1862, 0.0
    %v1951 = vrot.slane %v1950, 4
    %v1952 = vadd.f32 %v1950, %v1951
    %v1953 = vrot.slane %v1952, 2
    %v1954 = vadd.f32 %v1952, %v1953
    %v1955 = vrot.slane %v1954, 1
    %v1956 = vadd.f32 %v1954, %v1955
    %v1957 = vsel %vm721, %v1863, 0.0
    %v1958 = vrot.slane %v1957, 4
    %v1959 = vadd.f32 %v1957, %v1958
    %v1960 = vrot.slane %v1959, 2
    %v1961 = vadd.f32 %v1959, %v1960
    %v1962 = vrot.slane %v1961, 1
    %v1963 = vadd.f32 %v1961, %v1962
    %v1964 = vsel %vm721, %v1864, 0.0
    %v1965 = vrot.slane %v1964, 4
    %v1966 = vadd.f32 %v1964, %v1965
    %v1967 = vrot.slane %v1966, 2
    %v1968 = vadd.f32 %v1966, %v1967
    %v1969 = vrot.slane %v1968, 1
    %v1970 = vadd.f32 %v1968, %v1969
    %v1971 = vsel %vm721, %v1865, 0.0
    %v1972 = vrot.slane %v1971, 4
    %v1973 = vadd.f32 %v1971, %v1972
    %v1974 = vrot.slane %v1973, 2
    %v1975 = vadd.f32 %v1973, %v1974
    %v1976 = vrot.slane %v1975, 1
    %v1977 = vadd.f32 %v1975, %v1976
    %v1994 = vsel %vm850, %v1879, %v1872
    %v1995 = vsel %vm852, %v1886, %v1994
    %v1996 = vsel %vm854, %v1893, %v1995
    %v1997 = vsel %vm856, %v1900, %v1996
    %v1998 = vsel %vm858, %v1907, %v1997
    %v1999 = vsel %vm860, %v1914, %v1998
    %v2000 = vsel %vm862, %v1921, %v1999
    %v2001 = vsel %vm850, %v1935, %v1928
    %v2002 = vsel %vm852, %v1942, %v2001
    %v2003 = vsel %vm854, %v1949, %v2002
    %v2004 = vsel %vm856, %v1956, %v2003
    %v2005 = vsel %vm858, %v1963, %v2004
    %v2006 = vsel %vm860, %v1970, %v2005
    %v2007 = vsel %vm862, %v1977, %v2006
    %2008 = vrot.lane.b32.xlu0 %v2000, 8
    %v2009 = vpop.permute.xlu0 %2008
    %2010 = vrot.lane.b32.xlu0 %v2007, 8
    %v2011 = vpop.permute.xlu0 %2010
    %v2014 = vsel %vm175, %v1533, %v2009
    %v2015 = vsel %vm175, %v1534, %v2011
    %v2017 = vsel %vm883, %v2014, 0
    %v2020 = vsel %vm883, %v2015, 0
    %2022 = vmatprep.subr.mxu0 0.0
    %2023 = vmatpush1.msra.mxu0 0.0
    %2024 = vmatprep.subr.mxu0 0.0
    %2025 = vmatpush1.msra.mxu0 0.0
    %2026 = vmatprep.subr.mxu0 0.0
    %2027 = vmatpush1.msra.mxu0 0.0
    %2028 = vmatprep.subr.mxu0 0.0
    %2029 = vmatpush1.msra.mxu0 0.0
    %2030 = vmatprep.subr.mxu0 0.0
    %2031 = vmatpush1.msra.mxu0 0.0
    %2032 = vmatprep.subr.mxu0 0.0
    %2033 = vmatpush1.msra.mxu0 0.0
    %2034 = vmatprep.subr.mxu0 0.0
    %2035 = vmatpush1.msra.mxu0 0.0
    %2036 = vmatprep.subr.mxu0 0.0
    %2037 = vmatpush1.msra.mxu0 0.0
    %2038 = vmatprep.subr.mxu0 0.0
    %2039 = vmatpush1.msra.mxu0 0.0
    %2040 = vmatprep.subr.mxu0 0.0
    %2041 = vmatpush1.msra.mxu0 0.0
    %2042 = vmatprep.subr.mxu0 0.0
    %2043 = vmatpush1.msra.mxu0 0.0
    %2044 = vmatprep.subr.mxu0 0.0
    %2045 = vmatpush1.msra.mxu0 0.0
    %2046 = vmatprep.subr.mxu0 0.0
    %2047 = vmatpush1.msra.mxu0 0.0
    %2048 = vmatprep.subr.mxu0 0.0
    %2049 = vmatpush1.msra.mxu0 %v52
    %2050 = vmatprep.subr.mxu0 0.0
    %2051 = vmatpush1.msra.mxu0 %v51
    %2052 = vmatprep.subr.mxu0 0.0
    %2053 = vmatpush1.msra.mxu0 %v50
    %2054 = vmatprep.subr.mxu0 0.0
    %2055 = vmatpush2.msra.mxu0 0.0
    %2056 = vmatprep.subr.mxu0 0.0
    %2057 = vmatpush2.msra.mxu0 0.0
    %2058 = vmatprep.subr.mxu0 0.0
    %2059 = vmatpush2.msra.mxu0 0.0
    %2060 = vmatprep.subr.mxu0 0.0
    %2061 = vmatpush2.msra.mxu0 0.0
    %2062 = vmatprep.subr.mxu0 0.0
    %2063 = vmatpush2.msra.mxu0 0.0
    %2064 = vmatprep.subr.mxu0 0.0
    %2065 = vmatpush2.msra.mxu0 0.0
    %2066 = vmatprep.subr.mxu0 0.0
    %2067 = vmatpush2.msra.mxu0 0.0
    %2068 = vmatprep.subr.mxu0 0.0
    %2069 = vmatpush2.msra.mxu0 0.0
    %2070 = vmatprep.subr.mxu0 0.0
    %2071 = vmatpush2.msra.mxu0 0.0
    %2072 = vmatprep.subr.mxu0 0.0
    %2073 = vmatpush2.msra.mxu0 0.0
    %2074 = vmatprep.subr.mxu0 0.0
    %2075 = vmatpush2.msra.mxu0 0.0
    %2076 = vmatprep.subr.mxu0 0.0
    %2077 = vmatpush2.msra.mxu0 0.0
    %2078 = vmatprep.subr.mxu0 0.0
    %2079 = vmatpush2.msra.mxu0 0.0
    %2080 = vmatprep.subr.mxu0 0.0
    %2081 = vmatpush2.msra.mxu0 0.0
    %2082 = vmatprep.subr.mxu0 0.0
    %2083 = vmatpush2.msra.mxu0 0.0
    %2084 = vmatprep.subr.mxu0 0.0
    %2085 = vmatpush2.msra.mxu0 0.0
    %2086 = vmatprep.mubr.f32.mxu0 0.0
    %2087 = vmatmul.mubr.f32.gmra.mxu0 %v2017
    %v2088 = vpop.f32.mrf.mxu0
    %v2089 = vadd.f32 %v882, %v2088
    %v2090 = vpop.f32.mrf.mxu0
    %2091 = vmatprep.mubr.f32.mxu0 0.0
    %2092 = vmatmul.mubr.f32.gmra.mxu0 %v2020
    %v2093 = vpop.f32.mrf.mxu0
    %v2094 = vadd.f32 %v882, %v2093
    %v2095 = vpop.f32.mrf.mxu0
    %2096 = vdwg.mxu0
    %v2097 = vtanh.pop %v2089
    %v2098 = vtanh.pop %v2094
    %v2099 = vsel %vm186, %v2097, %v29
    %v2100 = vsel %vm187, %v2098, %v30
    %2101 = vrot.lane.b32.xlu0 %v29, 8
    %v2102 = vpop.permute.xlu0 %2101
    %2103 = vrot.lane.b32.xlu0 %v30, 8
    %v2104 = vpop.permute.xlu0 %2103
    %v2107 = vsel %vm175, %v2099, %v2102
    %v2108 = vsel %vm175, %v2100, %v2104
    %v2109 = vlaneseq
    %v2110 = vshrl.u32 %v2109, 7
    %v2111 = vsub.s32 0, %v2110
    %v2112 = vrot.slane %v56, %v2111
    %v2114 = vsel %vm721, %v2107, 0
    %v2117 = vsel %vm721, %v2108, 0
    %2119 = vmatprep.subr.mxu0 0.0
    %2120 = vmatpush1.msra.mxu0 0.0
    %2121 = vmatprep.subr.mxu0 0.0
    %2122 = vmatpush1.msra.mxu0 0.0
    %2123 = vmatprep.subr.mxu0 0.0
    %2124 = vmatpush1.msra.mxu0 0.0
    %2125 = vmatprep.subr.mxu0 0.0
    %2126 = vmatpush1.msra.mxu0 0.0
    %2127 = vmatprep.subr.mxu0 0.0
    %2128 = vmatpush1.msra.mxu0 0.0
    %2129 = vmatprep.subr.mxu0 0.0
    %2130 = vmatpush1.msra.mxu0 0.0
    %2131 = vmatprep.subr.mxu0 0.0
    %2132 = vmatpush1.msra.mxu0 0.0
    %2133 = vmatprep.subr.mxu0 0.0
    %2134 = vmatpush1.msra.mxu0 0.0
    %2135 = vmatprep.subr.mxu0 0.0
    %2136 = vmatpush1.msra.mxu0 0.0
    %2137 = vmatprep.subr.mxu0 0.0
    %2138 = vmatpush1.msra.mxu0 0.0
    %2139 = vmatprep.subr.mxu0 0.0
    %2140 = vmatpush1.msra.mxu0 0.0
    %2141 = vmatprep.subr.mxu0 0.0
    %2142 = vmatpush1.msra.mxu0 0.0
    %2143 = vmatprep.subr.mxu0 0.0
    %2144 = vmatpush1.msra.mxu0 0.0
    %2145 = vmatprep.subr.mxu0 0.0
    %2146 = vmatpush1.msra.mxu0 0.0
    %2147 = vmatprep.subr.mxu0 0.0
    %2148 = vmatpush1.msra.mxu0 %v55
    %2149 = vmatprep.subr.mxu0 0.0
    %2150 = vmatpush1.msra.mxu0 %v54
    %2151 = vmatprep.subr.mxu0 0.0
    %2152 = vmatpush2.msra.mxu0 0.0
    %2153 = vmatprep.subr.mxu0 0.0
    %2154 = vmatpush2.msra.mxu0 0.0
    %2155 = vmatprep.subr.mxu0 0.0
    %2156 = vmatpush2.msra.mxu0 0.0
    %2157 = vmatprep.subr.mxu0 0.0
    %2158 = vmatpush2.msra.mxu0 0.0
    %2159 = vmatprep.subr.mxu0 0.0
    %2160 = vmatpush2.msra.mxu0 0.0
    %2161 = vmatprep.subr.mxu0 0.0
    %2162 = vmatpush2.msra.mxu0 0.0
    %2163 = vmatprep.subr.mxu0 0.0
    %2164 = vmatpush2.msra.mxu0 0.0
    %2165 = vmatprep.subr.mxu0 0.0
    %2166 = vmatpush2.msra.mxu0 0.0
    %2167 = vmatprep.subr.mxu0 0.0
    %2168 = vmatpush2.msra.mxu0 0.0
    %2169 = vmatprep.subr.mxu0 0.0
    %2170 = vmatpush2.msra.mxu0 0.0
    %2171 = vmatprep.subr.mxu0 0.0
    %2172 = vmatpush2.msra.mxu0 0.0
    %2173 = vmatprep.subr.mxu0 0.0
    %2174 = vmatpush2.msra.mxu0 0.0
    %2175 = vmatprep.subr.mxu0 0.0
    %2176 = vmatpush2.msra.mxu0 0.0
    %2177 = vmatprep.subr.mxu0 0.0
    %2178 = vmatpush2.msra.mxu0 0.0
    %2179 = vmatprep.subr.mxu0 0.0
    %2180 = vmatpush2.msra.mxu0 0.0
    %2181 = vmatprep.subr.mxu0 0.0
    %2182 = vmatpush2.msra.mxu0 0.0
    %2183 = vmatprep.mubr.f32.mxu0 0.0
    %2184 = vmatmul.mubr.f32.gmra.mxu0 %v2114
    %v2185 = vpop.f32.mrf.mxu0
    %v2186 = vadd.f32 %v2112, %v2185
    %v2187 = vpop.f32.mrf.mxu0
    %2188 = vmatprep.mubr.f32.mxu0 0.0
    %2189 = vmatmul.mubr.f32.gmra.mxu0 %v2117
    %v2190 = vpop.f32.mrf.mxu0
    %v2191 = vadd.f32 %v2112, %v2190
    %v2192 = vpop.f32.mrf.mxu0
    %2193 = vdwg.mxu0
    %v2194 = vsel %vm186, %v2186, 0.0
    %v2195 = vsel %vm187, %v2191, 0.0
    %v2196 = vrot.slane %v2194, 4
    %v2197 = vadd.f32 %v2194, %v2196
    %v2198 = vrot.slane %v2197, 2
    %v2199 = vadd.f32 %v2197, %v2198
    %v2200 = vrot.slane %v2199, 1
    %v2201 = vadd.f32 %v2199, %v2200
    %v2202 = vrot.slane %v2195, 4
    %v2203 = vadd.f32 %v2195, %v2202
    %v2204 = vrot.slane %v2203, 2
    %v2205 = vadd.f32 %v2203, %v2204
    %v2206 = vrot.slane %v2205, 1
    %v2207 = vadd.f32 %v2205, %v2206
    %v2210 = vsel %vm850, %v2207, %v2201
    %2212 = vst [vmem:[#allocation2] sm:$0x3] %v2210
    // Predicated region
    $region30: #{tpu_custom_call.1} parent=1 // pred_check
      _
    $region31: #{tpu_custom_call.1} parent=1 // pred_check_branch
      %2214 = sbr.rel (0) target = $region33
    $region32: #{tpu_custom_call.1} parent=1 // pred_region
      %s2216 = ssub.s32 32, 32
      %2217 = vsyncadd [#allocation3], %s2216
      %s2219 = sshll.u32 [#allocation2], 4
      %s2220 = int_to_ptr.vmem [resolvable:$true] %s2219
      %2222 = dma.vmem_to_hbm [thread:$0]  %s2220, 32, %s7, [#allocation3]
    $region33: #{tpu_custom_call.1} parent=1 // pred_fallthru
      _
    // Predicated region
    $region34: #{tpu_custom_call.1} parent=1 // pred_check
      _
    $region35: #{tpu_custom_call.1} parent=1 // pred_check_branch
      %2224 = sbr.rel (0) target = $region37
    $region36: #{tpu_custom_call.1} parent=1 // pred_region
      %2225 = dma.done [#allocation3], 32
    $region37: #{tpu_custom_call.1} parent=1 // pred_fallthru
      _
    %2226 = vsyncpa [#allocation3], 1

</llo_original>
